<compile_context>
chip_gen: v7x
topology: tpu7x:2x2x1
jax: 0.10.0
libtpu: 0.0.40
codegen_flags: <defaults>
</compile_context>

<pallas_src>
import jax
import jax.numpy as jnp
from jax.experimental import pallas as pl
from jax.experimental.pallas import tpu as pltpu


def _project_kernel(x_ref, w1_ref, b1_ref, w2_ref, b2_ref, o_ref):
    # First matmul: native-dtype operands on the MXU, f32 accumulation.
    h = jnp.dot(x_ref[...], w1_ref[...], preferred_element_type=jnp.float32)
    # Fused bias + ReLU in f32 (single VPU pass over the (tb, d_hid) tile).
    h = jnp.maximum(h + b1_ref[...].astype(jnp.float32), 0.0)
    # Second matmul: cast the hidden tile to the weight dtype (no-op for f32,
    # bf16 for bf16 weights so the MXU runs at its bf16 rate).
    y = jnp.dot(h.astype(w2_ref.dtype), w2_ref[...],
                preferred_element_type=jnp.float32)
    y = y + b2_ref[...].astype(jnp.float32)
    # Cast to the output dtype only at the final (lane-dense) store.
    o_ref[...] = y.astype(o_ref.dtype)


def _vmem_cap_bytes():
    """Per-chip-generation usable VMEM budget with headroom for compiler scratch."""
    try:
        cap = int(pltpu.get_tpu_info().vmem_capacity_bytes)
    except Exception:
        cap = 64 << 20  # conservative default: v7x per-TensorCore VMEM
    return max(16 << 20, min(cap - (20 << 20), 100 << 20))


def _vmem_estimate(tb, d_in, d_hid, d_out, itm_x, itm_w, itm_out,
                   weight_buffers):
    """Estimated VMEM working set for one grid step."""
    weights = weight_buffers * (d_in * d_hid + d_hid * d_out
                                + d_hid + d_out) * itm_w
    tiles = 2 * tb * d_in * itm_x + 2 * tb * d_out * itm_out  # double-buffered x / out
    interm = tb * d_hid * 4 + tb * d_out * 4                  # f32 h and y
    if itm_w < 4:
        interm += tb * d_hid * itm_w                          # low-precision copy of h
    return weights + tiles + interm + (2 << 20)               # misc headroom


def _resident_spec(shape, single_buffer):
    """BlockSpec for an operand that stays resident across all batch tiles."""
    index_map = lambda i: (0,) * len(shape)
    if single_buffer:
        try:
            return pl.BlockSpec(shape, index_map,
                                pipeline_mode=pl.Buffered(1))
        except Exception:
            pass
    return pl.BlockSpec(shape, index_map)


def _select_tile(B, block_b, align, d_in, d_hid, d_out, itm_x, itm_w, itm_out,
                 cap):
    if B <= align:
        return B
    tb = max(align, (min(block_b, B) // align) * align)
    # Guarantee >= 2 grid steps so both v7x TensorCores get work and the
    # x/out DMAs actually pipeline.
    if pl.cdiv(B, tb) < 2:
        half = (((B + 1) // 2 + align - 1) // align) * align
        tb = min(tb, max(align, half))
    # Shrink until the (single-buffered-weight) working set fits the budget.
    while tb > align and _vmem_estimate(tb, d_in, d_hid, d_out, itm_x, itm_w,
                                        itm_out, weight_buffers=1) > cap:
        tb = max(align, ((tb // 2) // align) * align)
    return tb


def project_forward(feature, w1, b1, w2, b2, *, block_b=512):
    """feature: (B, input_dim); w1: (input_dim, output_dim); b1: (output_dim,)
    w2: (output_dim, output_dim); b2: (output_dim,). Returns (B, output_dim)."""
    B, d_in = feature.shape
    d_hid = w1.shape[1]
    d_out = w2.shape[1]

    itm_x = feature.dtype.itemsize
    itm_w = w1.dtype.itemsize
    itm_out = itm_x

    cap = _vmem_cap_bytes()
    align = 16 if itm_x < 4 else 8
    tb = _select_tile(B, block_b, align, d_in, d_hid, d_out,
                      itm_x, itm_w, itm_out, cap)
    grid = (pl.cdiv(B, tb),)

    b1_2d = b1.reshape(1, d_hid)
    b2_2d = b2.reshape(1, d_out)

    # Declare enough scoped VMEM even for the double-buffered-weight fallback,
    # capped at the per-generation budget.
    # NOTE: resident weights are a hard ceiling: if d_in*d_hid + d_hid*d_out
    # no longer fits the budget, a K-tiled ("arbitrary") grid axis over d_hid
    # with an f32 VMEM accumulator would be needed instead.
    est = _vmem_estimate(tb, d_in, d_hid, d_out, itm_x, itm_w, itm_out,
                         weight_buffers=2)
    vmem_limit = int(min(cap, max(est + (1 << 20), 16 << 20)))

    cost = pl.CostEstimate(
        flops=2 * B * d_hid * (d_in + d_out),
        transcendentals=0,
        bytes_accessed=(B * d_in * itm_x + B * d_out * itm_out
                        + (d_in * d_hid + d_hid * d_out + d_hid + d_out) * itm_w),
    )

    def run(single_buffer_weights):
        call = pl.pallas_call(
            _project_kernel,
            out_shape=jax.ShapeDtypeStruct((B, d_out), feature.dtype),
            grid_spec=pltpu.PrefetchScalarGridSpec(
                num_scalar_prefetch=0,
                grid=grid,
                in_specs=[
                    pl.BlockSpec((tb, d_in), lambda i: (i, 0)),            # x tile
                    _resident_spec((d_in, d_hid), single_buffer_weights),  # w1
                    _resident_spec((1, d_hid), single_buffer_weights),     # b1
                    _resident_spec((d_hid, d_out), single_buffer_weights), # w2
                    _resident_spec((1, d_out), single_buffer_weights),     # b2
                ],
                out_specs=pl.BlockSpec((tb, d_out), lambda i: (i, 0)),
            ),
            compiler_params=pltpu.CompilerParams(
                dimension_semantics=("parallel",),   # shards batch tiles across TCs
                vmem_limit_bytes=vmem_limit,
            ),
            cost_estimate=cost,
        )
        return call(feature, w1, b1_2d, w2, b2_2d)

    try:
        return run(True)
    except Exception:
        # Fallback: default double-buffered resident weights if Buffered(1)
        # is rejected by this jax / Mosaic version.
        return run(False)


def init_params(key, input_dim, output_dim, dtype=jnp.float32):
    """Deterministic synthetic init (PyTorch-Linear-style uniform bounds)."""
    k1, k2, k3, k4 = jax.random.split(key, 4)
    bound1 = 1.0 / (input_dim ** 0.5)
    bound2 = 1.0 / (output_dim ** 0.5)
    # Stored as (in, out) — i.e. PyTorch weight transposed.
    w1 = jax.random.uniform(k1, (input_dim, output_dim), dtype, -bound1, bound1)
    b1 = jax.random.uniform(k2, (output_dim,), dtype, -bound1, bound1)
    w2 = jax.random.uniform(k3, (output_dim, output_dim), dtype, -bound2, bound2)
    b2 = jax.random.uniform(k4, (output_dim,), dtype, -bound2, bound2)
    return w1, b1, w2, b2


if __name__ == "__main__":
    key = jax.random.PRNGKey(0)
    k_x, k_p = jax.random.split(key)

    # Small but lane/MXU-aligned demo shapes (multiples of 128) so the output
    # store is unmasked and the batch grid axis has multiple steps.
    batch, input_dim, output_dim = 512, 256, 256
    x = jax.random.normal(k_x, (batch, input_dim), dtype=jnp.float32)
    w1, b1, w2, b2 = init_params(k_p, input_dim, output_dim)

    out = project_forward(x, w1, b1, w2, b2)
    out = jax.block_until_ready(out)

    # Reference check in plain JAX (f32).
    ref = jnp.maximum(x @ w1 + b1, 0.0) @ w2 + b2
    assert out.shape == (batch, output_dim)
    assert jnp.allclose(out, ref, atol=2e-3, rtol=2e-3)

    # Ragged batch: no host-side pad/slice — Pallas masks the partial tail tile.
    xr = x[:333]
    out_r = jax.block_until_ready(project_forward(xr, w1, b1, w2, b2))
    assert out_r.shape == (333, output_dim)
    assert jnp.allclose(out_r, ref[:333], atol=2e-3, rtol=2e-3)

    # bf16 path sanity check: operands go straight to the MXU, no upfront casts.
    xb = x.astype(jnp.bfloat16)
    out_bf16 = project_forward(xb, w1.astype(jnp.bfloat16), b1.astype(jnp.bfloat16),
                               w2.astype(jnp.bfloat16), b2.astype(jnp.bfloat16))
    out_bf16 = jax.block_until_ready(out_bf16)
    assert out_bf16.shape == (batch, output_dim)
    assert jnp.allclose(out_bf16.astype(jnp.float32), ref, atol=0.2, rtol=0.2)

    print("KERNEL_OK")
</pallas_src>

<mosaic_0001>
module attributes {stable_mosaic.version = 11 : i64} {
  func.func @_project_kernel(%arg0: i32, %arg1: memref<256x256xf32, #tpu.memory_space<vmem>>, %arg2: memref<256x256xf32, #tpu.memory_space<vmem>>, %arg3: memref<1x256xf32, #tpu.memory_space<vmem>>, %arg4: memref<256x256xf32, #tpu.memory_space<vmem>>, %arg5: memref<1x256xf32, #tpu.memory_space<vmem>>, %arg6: memref<256x256xf32, #tpu.memory_space<vmem>>) attributes {dimension_semantics = [#tpu.dimension_semantics<parallel>], iteration_bounds = array<i64: 2>, scalar_prefetch = 0 : i64, scratch_operands = 0 : i64, tpu.core_type = #tpu.core_type<tc>, window_params = [{transform_indices = @transform_0, window_bounds = array<i64: 256, 256>}, {pipeline_mode = #tpu.pipeline_mode<synchronous>, transform_indices = @transform_1, window_bounds = array<i64: 256, 256>}, {pipeline_mode = #tpu.pipeline_mode<synchronous>, transform_indices = @transform_2, window_bounds = array<i64: 1, 256>}, {pipeline_mode = #tpu.pipeline_mode<synchronous>, transform_indices = @transform_3, window_bounds = array<i64: 256, 256>}, {pipeline_mode = #tpu.pipeline_mode<synchronous>, transform_indices = @transform_4, window_bounds = array<i64: 1, 256>}, {transform_indices = @transform_5, window_bounds = array<i64: 256, 256>}]} {
    %c0 = arith.constant 0 : index
    %c0_0 = arith.constant 0 : index
    %0 = vector.load %arg1[%c0, %c0_0] : memref<256x256xf32, #tpu.memory_space<vmem>>, vector<256x256xf32>
    %c0_1 = arith.constant 0 : index
    %c0_2 = arith.constant 0 : index
    %1 = vector.load %arg2[%c0_1, %c0_2] : memref<256x256xf32, #tpu.memory_space<vmem>>, vector<256x256xf32>
    %cst = arith.constant dense<0.000000e+00> : vector<256x256xf32>
    %2 = tpu.matmul %0, %1, %cst {dimension_numbers = #tpu.dot_dimension_numbers<[1], [0], [0], [1], [0, 0, 1, 1], [], []>} : vector<256x256xf32>, vector<256x256xf32>, vector<256x256xf32> -> vector<256x256xf32>
    %c0_3 = arith.constant 0 : index
    %c0_4 = arith.constant 0 : index
    %3 = vector.load %arg3[%c0_3, %c0_4] : memref<1x256xf32, #tpu.memory_space<vmem>>, vector<1x256xf32>
    %4 = vector.broadcast %3 : vector<1x256xf32> to vector<256x256xf32>
    %5 = arith.addf %2, %4 : vector<256x256xf32>
    %cst_5 = arith.constant 0.000000e+00 : f32
    %6 = vector.broadcast %cst_5 : f32 to vector<256x256xf32>
    %7 = arith.maximumf %5, %6 : vector<256x256xf32>
    %c0_6 = arith.constant 0 : index
    %c0_7 = arith.constant 0 : index
    %8 = vector.load %arg4[%c0_6, %c0_7] : memref<256x256xf32, #tpu.memory_space<vmem>>, vector<256x256xf32>
    %cst_8 = arith.constant dense<0.000000e+00> : vector<256x256xf32>
    %9 = tpu.matmul %7, %8, %cst_8 {dimension_numbers = #tpu.dot_dimension_numbers<[1], [0], [0], [1], [0, 0, 1, 1], [], []>} : vector<256x256xf32>, vector<256x256xf32>, vector<256x256xf32> -> vector<256x256xf32>
    %c0_9 = arith.constant 0 : index
    %c0_10 = arith.constant 0 : index
    %10 = vector.load %arg5[%c0_9, %c0_10] : memref<1x256xf32, #tpu.memory_space<vmem>>, vector<1x256xf32>
    %11 = vector.broadcast %10 : vector<1x256xf32> to vector<256x256xf32>
    %12 = arith.addf %9, %11 : vector<256x256xf32>
    %c0_11 = arith.constant 0 : index
    %c0_12 = arith.constant 0 : index
    %13 = vector.load %arg6[%c0_11, %c0_12] : memref<256x256xf32, #tpu.memory_space<vmem>>, vector<256x256xf32>
    tpu.vector_store %arg6[%c0_11, %c0_12], %12 {strides = array<i32>} : memref<256x256xf32, #tpu.memory_space<vmem>>, vector<256x256xf32>,
    return
  }
  func.func @transform_0(%arg0: i32) -> (i32, i32) {
    %c0_i32 = arith.constant 0 : i32
    %c0_i32_0 = arith.constant 0 : i32
    return %arg0, %c0_i32 : i32, i32
  }
  func.func @transform_1(%arg0: i32) -> (i32, i32) {
    %c0_i32 = arith.constant 0 : i32
    %c0_i32_0 = arith.constant 0 : i32
    %c0_i32_1 = arith.constant 0 : i32
    return %c0_i32, %c0_i32_0 : i32, i32
  }
  func.func @transform_2(%arg0: i32) -> (i32, i32) {
    %c0_i32 = arith.constant 0 : i32
    %c0_i32_0 = arith.constant 0 : i32
    %c0_i32_1 = arith.constant 0 : i32
    return %c0_i32, %c0_i32_0 : i32, i32
  }
  func.func @transform_3(%arg0: i32) -> (i32, i32) {
    %c0_i32 = arith.constant 0 : i32
    %c0_i32_0 = arith.constant 0 : i32
    %c0_i32_1 = arith.constant 0 : i32
    return %c0_i32, %c0_i32_0 : i32, i32
  }
  func.func @transform_4(%arg0: i32) -> (i32, i32) {
    %c0_i32 = arith.constant 0 : i32
    %c0_i32_0 = arith.constant 0 : i32
    %c0_i32_1 = arith.constant 0 : i32
    return %c0_i32, %c0_i32_0 : i32, i32
  }
  func.func @transform_5(%arg0: i32) -> (i32, i32) {
    %c0_i32 = arith.constant 0 : i32
    %c0_i32_0 = arith.constant 0 : i32
    return %arg0, %c0_i32 : i32, i32
  }
}

module attributes {stable_mosaic.version = 11 : i64} {
  func.func @_project_kernel(%arg0: i32, %arg1: memref<256x256xf32, #tpu.memory_space<vmem>>, %arg2: memref<256x256xf32, #tpu.memory_space<vmem>>, %arg3: memref<1x256xf32, #tpu.memory_space<vmem>>, %arg4: memref<256x256xf32, #tpu.memory_space<vmem>>, %arg5: memref<1x256xf32, #tpu.memory_space<vmem>>, %arg6: memref<256x256xf32, #tpu.memory_space<vmem>>) attributes {dimension_semantics = [#tpu.dimension_semantics<parallel>], iteration_bounds = array<i64: 2>, scalar_prefetch = 0 : i64, scratch_operands = 0 : i64, tpu.core_type = #tpu.core_type<tc>, window_params = [{transform_indices = @transform_0, window_bounds = array<i64: 256, 256>}, {pipeline_mode = #tpu.pipeline_mode<synchronous>, transform_indices = @transform_1, window_bounds = array<i64: 256, 256>}, {pipeline_mode = #tpu.pipeline_mode<synchronous>, transform_indices = @transform_2, window_bounds = array<i64: 1, 256>}, {pipeline_mode = #tpu.pipeline_mode<synchronous>, transform_indices = @transform_3, window_bounds = array<i64: 256, 256>}, {pipeline_mode = #tpu.pipeline_mode<synchronous>, transform_indices = @transform_4, window_bounds = array<i64: 1, 256>}, {transform_indices = @transform_5, window_bounds = array<i64: 256, 256>}]} {
    %c0 = arith.constant 0 : index
    %c0_0 = arith.constant 0 : index
    %0 = vector.load %arg1[%c0, %c0_0] : memref<256x256xf32, #tpu.memory_space<vmem>>, vector<256x256xf32>
    %c0_1 = arith.constant 0 : index
    %c0_2 = arith.constant 0 : index
    %1 = vector.load %arg2[%c0_1, %c0_2] : memref<256x256xf32, #tpu.memory_space<vmem>>, vector<256x256xf32>
    %cst = arith.constant dense<0.000000e+00> : vector<256x256xf32>
    %2 = tpu.matmul %0, %1, %cst {dimension_numbers = #tpu.dot_dimension_numbers<[1], [0], [0], [1], [0, 0, 1, 1], [], []>} : vector<256x256xf32>, vector<256x256xf32>, vector<256x256xf32> -> vector<256x256xf32>
    %c0_3 = arith.constant 0 : index
    %c0_4 = arith.constant 0 : index
    %3 = vector.load %arg3[%c0_3, %c0_4] : memref<1x256xf32, #tpu.memory_space<vmem>>, vector<1x256xf32>
    %4 = vector.broadcast %3 : vector<1x256xf32> to vector<256x256xf32>
    %5 = arith.addf %2, %4 : vector<256x256xf32>
    %cst_5 = arith.constant 0.000000e+00 : f32
    %6 = vector.broadcast %cst_5 : f32 to vector<256x256xf32>
    %7 = arith.maximumf %5, %6 : vector<256x256xf32>
    %c0_6 = arith.constant 0 : index
    %c0_7 = arith.constant 0 : index
    %8 = vector.load %arg4[%c0_6, %c0_7] : memref<256x256xf32, #tpu.memory_space<vmem>>, vector<256x256xf32>
    %cst_8 = arith.constant dense<0.000000e+00> : vector<256x256xf32>
    %9 = tpu.matmul %7, %8, %cst_8 {dimension_numbers = #tpu.dot_dimension_numbers<[1], [0], [0], [1], [0, 0, 1, 1], [], []>} : vector<256x256xf32>, vector<256x256xf32>, vector<256x256xf32> -> vector<256x256xf32>
    %c0_9 = arith.constant 0 : index
    %c0_10 = arith.constant 0 : index
    %10 = vector.load %arg5[%c0_9, %c0_10] : memref<1x256xf32, #tpu.memory_space<vmem>>, vector<1x256xf32>
    %11 = vector.broadcast %10 : vector<1x256xf32> to vector<256x256xf32>
    %12 = arith.addf %9, %11 : vector<256x256xf32>
    %c0_11 = arith.constant 0 : index
    %c0_12 = arith.constant 0 : index
    %13 = vector.load %arg6[%c0_11, %c0_12] : memref<256x256xf32, #tpu.memory_space<vmem>>, vector<256x256xf32>
    tpu.vector_store %arg6[%c0_11, %c0_12], %12 {strides = array<i32>} : memref<256x256xf32, #tpu.memory_space<vmem>>, vector<256x256xf32>,
    return
  }
  func.func @transform_0(%arg0: i32) -> (i32, i32) {
    %c0_i32 = arith.constant 0 : i32
    %c0_i32_0 = arith.constant 0 : i32
    return %arg0, %c0_i32 : i32, i32
  }
  func.func @transform_1(%arg0: i32) -> (i32, i32) {
    %c0_i32 = arith.constant 0 : i32
    %c0_i32_0 = arith.constant 0 : i32
    %c0_i32_1 = arith.constant 0 : i32
    return %c0_i32, %c0_i32_0 : i32, i32
  }
  func.func @transform_2(%arg0: i32) -> (i32, i32) {
    %c0_i32 = arith.constant 0 : i32
    %c0_i32_0 = arith.constant 0 : i32
    %c0_i32_1 = arith.constant 0 : i32
    return %c0_i32, %c0_i32_0 : i32, i32
  }
  func.func @transform_3(%arg0: i32) -> (i32, i32) {
    %c0_i32 = arith.constant 0 : i32
    %c0_i32_0 = arith.constant 0 : i32
    %c0_i32_1 = arith.constant 0 : i32
    return %c0_i32, %c0_i32_0 : i32, i32
  }
  func.func @transform_4(%arg0: i32) -> (i32, i32) {
    %c0_i32 = arith.constant 0 : i32
    %c0_i32_0 = arith.constant 0 : i32
    %c0_i32_1 = arith.constant 0 : i32
    return %c0_i32, %c0_i32_0 : i32, i32
  }
  func.func @transform_5(%arg0: i32) -> (i32, i32) {
    %c0_i32 = arith.constant 0 : i32
    %c0_i32_0 = arith.constant 0 : i32
    return %arg0, %c0_i32 : i32, i32
  }
}

</mosaic_0001>

<llo_original>
// kernel: tpu_custom_call.1
$region0: #{tpu_custom_call.1}
  #allocation0 [shape = 'u32[]', space=smem, size = 0x4, offset = 0x4, fixed_abs, tag = 'smem constant byte address 0x4 - core index']
  #allocation1 [shape = 'u32[144,128]{1,0:T(1,128)}', space=vmem, size = 0x12000, scoped, tag = 'internal scratch']
  %s0 = inlined_call_operand.hbm [shape: f32[512,256], index: 0, kind: input, shape index: {}]
  %s1 = inlined_call_operand.hbm [shape: f32[256,256], index: 1, kind: input, shape index: {}]
  %s2 = inlined_call_operand.vmem [shape: f32[1,256], index: 2, kind: input, shape index: {}]
  %s3 = inlined_call_operand.hbm [shape: f32[256,256], index: 3, kind: input, shape index: {}]
  %s4 = inlined_call_operand.vmem [shape: f32[1,256], index: 4, kind: input, shape index: {}]
  %s5 = inlined_call_operand.hbm [shape: f32[512,256], index: 5, kind: output, shape index: {}]
  %s6 = sld [smem:[#allocation0]]
  $region65: #{tpu_custom_call.1} parent=0
    _
  %s8 = ssub.s32 1, %s6
  %s9 = scalar_select 0, %s8, %s6
  $region1: #{tpu_custom_call.1} parent=0
    #allocation2 [shape = 'u8[524288]{0}', space=vmem, size = 0x80000, scoped, tag = 'input window, operand 0']
    #allocation3 [shape = 's32[2]{0}', space=sflag, size = 0x8, scoped, tag = 'scoped memory for tpu_custom_call.1']
    #allocation4 [shape = 's32[2]{0}', space=sflag, size = 0x8, scoped, tag = 'scoped memory for tpu_custom_call.1']
    #allocation5 [shape = 'u8[262144]{0}', space=vmem, size = 0x40000, scoped, tag = 'input window, operand 1, single buffered']
    #allocation6 [shape = 's32[1]{0}', space=sflag, size = 0x4, scoped, tag = 'scoped memory for tpu_custom_call.1']
    #allocation7 [shape = 'u8[262144]{0}', space=vmem, size = 0x40000, scoped, tag = 'input window, operand 3, single buffered']
    #allocation8 [shape = 'u8[524288]{0}', space=vmem, size = 0x80000, scoped, tag = 'output window, operand 0']
    %10 = vsyncpa [#allocation3], 0
    %s11 = scalar_lea.sflag [#allocation3], 1
    %12 = vsyncpa %s11, 0
    %13 = vsyncpa [#allocation6], 0
    %14 = vsyncpa [#allocation4], 0
    %s15 = scalar_lea.sflag [#allocation4], 1
    %16 = vsyncpa %s15, 0
    loop: start=0, step=1, limit=4
    $region2: #{tpu_custom_call.1} parent=1 // loop_pre_header
      _
    $region3: #{tpu_custom_call.1} parent=1 // loop_header
      %s18 = sphi 0, %s22
      %p19 = scmp.ge.s32.totalorder %s18, 4
      %s28 = sphi 0, %s30
      %s31 = sphi 0, %s28
      %s32 = sphi 0, %s31
      %s48 = sphi 0, %s32
      %s52 = sphi 0, %s52
      %s54 = sphi 0, %s52
      %s55 = sphi 0, %s54
      %s69 = sphi 0, %s55
      %s73 = sphi 0, %s73
      %s75 = sphi 0, %s73
      %s76 = sphi 0, %s75
      %s90 = sphi 0, %s76
      %s94 = sphi 0, %s94
      %s96 = sphi 0, %s94
      %s97 = sphi 0, %s96
      %s111 = sphi 0, %s97
      %s115 = sphi 0, %s115
      %s117 = sphi 0, %s115
      %s118 = sphi 0, %s117
      %s132 = sphi 0, %s118
      %s138 = sphi 0, %s140
      %s141 = sphi 0, %s138
      %s142 = sphi 0, %s141
      %s158 = sphi 0, %s142
    $region4: #{tpu_custom_call.1} parent=1 // loop_header_branch
      %21 = sbr.rel (%p19) target = $region8
    $region5: #{tpu_custom_call.1} parent=1 // loop_body
      %s23 = ssub.s32 %s18, 1
      %s24 = ssub.s32 %s18, 2
      %s25 = sadd.s32 %s18, 1
      %s26 = ssub.s32 %s18, %s25
      %p27 = scmp.eq.s32.totalorder %s26, 0
      %s29 = sadd.s32 %s28, 1
      %s30 = scalar_select %p27, %s28, %s29
      %p33 = pneg %p27
      %p34 = scmp.eq.s32.totalorder %s18, 1
      %p35 = por %p33, %p34
      %p36 = scmp.ne.s32.totalorder %s28, %s31
      %p37 = scmp.eq.s32.totalorder %s18, 0
      %p38 = por %p36, %p37
      %p39 = scmp.ne.s32.totalorder %s28, %s31
      %p40 = scmp.eq.s32.totalorder %s23, 1
      %p41 = por %p39, %p40
      %p42 = scmp.ne.s32.totalorder %s31, %s32
      %p43 = scmp.eq.s32.totalorder %s23, 0
      %p44 = por %p42, %p43
      %p45 = scmp.ne.s32.totalorder %s31, %s32
      %p46 = scmp.eq.s32.totalorder %s24, 1
      %p47 = por %p45, %p46
      %p49 = scmp.ne.s32.totalorder %s32, %s48
      %p50 = scmp.eq.s32.totalorder %s24, 0
      %p51 = por %p49, %p50
      %s53 = sadd.s32 %s52, 1
      %p56 = scmp.eq.s32.totalorder %s18, 1
      %p57 = scmp.ne.s32.totalorder %s52, %s54
      %p58 = scmp.eq.s32.totalorder %s18, 0
      %p59 = por %p57, %p58
      %p60 = scmp.ne.s32.totalorder %s52, %s54
      %p61 = scmp.eq.s32.totalorder %s23, 1
      %p62 = por %p60, %p61
      %p63 = scmp.ne.s32.totalorder %s54, %s55
      %p64 = scmp.eq.s32.totalorder %s23, 0
      %p65 = por %p63, %p64
      %p66 = scmp.ne.s32.totalorder %s54, %s55
      %p67 = scmp.eq.s32.totalorder %s24, 1
      %p68 = por %p66, %p67
      %p70 = scmp.ne.s32.totalorder %s55, %s69
      %p71 = scmp.eq.s32.totalorder %s24, 0
      %p72 = por %p70, %p71
      %s74 = sadd.s32 %s73, 1
      %p77 = scmp.eq.s32.totalorder %s18, 1
      %p78 = scmp.ne.s32.totalorder %s73, %s75
      %p79 = scmp.eq.s32.totalorder %s18, 0
      %p80 = por %p78, %p79
      %p81 = scmp.ne.s32.totalorder %s73, %s75
      %p82 = scmp.eq.s32.totalorder %s23, 1
      %p83 = por %p81, %p82
      %p84 = scmp.ne.s32.totalorder %s75, %s76
      %p85 = scmp.eq.s32.totalorder %s23, 0
      %p86 = por %p84, %p85
      %p87 = scmp.ne.s32.totalorder %s75, %s76
      %p88 = scmp.eq.s32.totalorder %s24, 1
      %p89 = por %p87, %p88
      %p91 = scmp.ne.s32.totalorder %s76, %s90
      %p92 = scmp.eq.s32.totalorder %s24, 0
      %p93 = por %p91, %p92
      %s95 = sadd.s32 %s94, 1
      %p98 = scmp.eq.s32.totalorder %s18, 1
      %p99 = scmp.ne.s32.totalorder %s94, %s96
      %p100 = scmp.eq.s32.totalorder %s18, 0
      %p101 = por %p99, %p100
      %p102 = scmp.ne.s32.totalorder %s94, %s96
      %p103 = scmp.eq.s32.totalorder %s23, 1
      %p104 = por %p102, %p103
      %p105 = scmp.ne.s32.totalorder %s96, %s97
      %p106 = scmp.eq.s32.totalorder %s23, 0
      %p107 = por %p105, %p106
      %p108 = scmp.ne.s32.totalorder %s96, %s97
      %p109 = scmp.eq.s32.totalorder %s24, 1
      %p110 = por %p108, %p109
      %p112 = scmp.ne.s32.totalorder %s97, %s111
      %p113 = scmp.eq.s32.totalorder %s24, 0
      %p114 = por %p112, %p113
      %s116 = sadd.s32 %s115, 1
      %p119 = scmp.eq.s32.totalorder %s18, 1
      %p120 = scmp.ne.s32.totalorder %s115, %s117
      %p121 = scmp.eq.s32.totalorder %s18, 0
      %p122 = por %p120, %p121
      %p123 = scmp.ne.s32.totalorder %s115, %s117
      %p124 = scmp.eq.s32.totalorder %s23, 1
      %p125 = por %p123, %p124
      %p126 = scmp.ne.s32.totalorder %s117, %s118
      %p127 = scmp.eq.s32.totalorder %s23, 0
      %p128 = por %p126, %p127
      %p129 = scmp.ne.s32.totalorder %s117, %s118
      %p130 = scmp.eq.s32.totalorder %s24, 1
      %p131 = por %p129, %p130
      %p133 = scmp.ne.s32.totalorder %s118, %s132
      %p134 = scmp.eq.s32.totalorder %s24, 0
      %p135 = por %p133, %p134
      %s136 = ssub.s32 %s18, %s25
      %p137 = scmp.eq.s32.totalorder %s136, 0
      %s139 = sadd.s32 %s138, 1
      %s140 = scalar_select %p137, %s138, %s139
      %p143 = pneg %p137
      %p144 = scmp.eq.s32.totalorder %s18, 1
      %p145 = por %p143, %p144
      %p146 = scmp.ne.s32.totalorder %s138, %s141
      %p147 = scmp.eq.s32.totalorder %s18, 0
      %p148 = por %p146, %p147
      %p149 = scmp.ne.s32.totalorder %s138, %s141
      %p150 = scmp.eq.s32.totalorder %s23, 1
      %p151 = por %p149, %p150
      %p152 = scmp.ne.s32.totalorder %s141, %s142
      %p153 = scmp.eq.s32.totalorder %s23, 0
      %p154 = por %p152, %p153
      %p155 = scmp.ne.s32.totalorder %s141, %s142
      %p156 = scmp.eq.s32.totalorder %s24, 1
      %p157 = por %p155, %p156
      %p159 = scmp.ne.s32.totalorder %s142, %s158
      %p160 = scmp.eq.s32.totalorder %s24, 0
      %p161 = por %p159, %p160
      %p162 = scmp.le.s32.totalorder 1, %s18
      %p163 = scmp.lt.s32.totalorder %s18, 3
      %p164 = pnand %p162, %p163
      %p165 = pneg %p164
      // Predicated region
      $region9: #{tpu_custom_call.1} parent=5 // pred_check
        _
      $region10: #{tpu_custom_call.1} parent=5 // pred_check_branch
        %167 = sbr.rel (%p164) target = $region12
      $region11: #{tpu_custom_call.1} parent=5 // pred_region
        %s168 = ssub.s32 %s18, 1
        // Predicated region
        $region13: #{tpu_custom_call.1} parent=11 // pred_check
          %p169 = pneg %p65
        $region14: #{tpu_custom_call.1} parent=11 // pred_check_branch
          %171 = sbr.rel (%p169) target = $region16
        $region15: #{tpu_custom_call.1} parent=11 // pred_region
          %s173 = ssub.s32 8192, 8192
          %174 = vsyncadd [#allocation6], %s173
          %s175 = sshll.u32 [#allocation5], 4
          %s176 = int_to_ptr.vmem [resolvable:$true] %s175
          %181 = dma.hbm_to_vmem [thread:$0]  %s1, 8192, %s176, [#allocation6], 256, 256, 16
        $region16: #{tpu_custom_call.1} parent=11 // pred_fallthru
          _
        // Predicated region
        $region17: #{tpu_custom_call.1} parent=11 // pred_check
          %p182 = pneg %p86
        $region18: #{tpu_custom_call.1} parent=11 // pred_check_branch
          %184 = sbr.rel (%p182) target = $region20
        $region19: #{tpu_custom_call.1} parent=11 // pred_region
          _
        $region20: #{tpu_custom_call.1} parent=11 // pred_fallthru
          _
        // Predicated region
        $region21: #{tpu_custom_call.1} parent=11 // pred_check
          %p185 = pneg %p107
        $region22: #{tpu_custom_call.1} parent=11 // pred_check_branch
          %187 = sbr.rel (%p185) target = $region24
        $region23: #{tpu_custom_call.1} parent=11 // pred_region
          %s189 = ssub.s32 8192, 8192
          %190 = vsyncadd [#allocation6], %s189
          %s191 = sshll.u32 [#allocation7], 4
          %s192 = int_to_ptr.vmem [resolvable:$true] %s191
          %197 = dma.hbm_to_vmem [thread:$0]  %s3, 8192, %s192, [#allocation6], 256, 256, 16
        $region24: #{tpu_custom_call.1} parent=11 // pred_fallthru
          _
        // Predicated region
        $region25: #{tpu_custom_call.1} parent=11 // pred_check
          %p198 = pneg %p128
        $region26: #{tpu_custom_call.1} parent=11 // pred_check_branch
          %200 = sbr.rel (%p198) target = $region28
        $region27: #{tpu_custom_call.1} parent=11 // pred_region
          _
        $region28: #{tpu_custom_call.1} parent=11 // pred_fallthru
          _
      $region12: #{tpu_custom_call.1} parent=5 // pred_fallthru
        _
      %p201 = scmp.lt.s32.totalorder %s18, 2
      // Predicated region
      $region29: #{tpu_custom_call.1} parent=5 // pred_check
        %p202 = pneg %p201
      $region30: #{tpu_custom_call.1} parent=5 // pred_check_branch
        %204 = sbr.rel (%p202) target = $region32
      $region31: #{tpu_custom_call.1} parent=5 // pred_region
        // Predicated region
        $region33: #{tpu_custom_call.1} parent=31 // pred_check
          %p205 = pneg %p38
        $region34: #{tpu_custom_call.1} parent=31 // pred_check_branch
          %207 = sbr.rel (%p205) target = $region36
        $region35: #{tpu_custom_call.1} parent=31 // pred_region
          %s208 = sand.u32 %s28, 1
          %s209 = scalar_lea.sflag [#allocation3], %s208
          %s210 = sand.u32 %s28, 1
          %s211 = smul.addr %s210, 512
          %s212 = scalar_lea.vmem [#allocation2], %s211
          %s213 = smul.u32 32, %s18
          %s215 = ssub.s32 8192, 8192
          %216 = vsyncadd %s209, %s215
          %s217 = smul.addr %s213, 2
          %s218 = smul.addr %s217, 128
          %s219 = scalar_lea.hbm %s0, %s218
          %s220 = sshll.u32 %s212, 4
          %s221 = int_to_ptr.vmem [resolvable:$true] %s220
          %226 = dma.hbm_to_vmem [thread:$0]  %s219, 8192, %s221, %s209, 256, 256, 16
        $region36: #{tpu_custom_call.1} parent=31 // pred_fallthru
          _
      $region32: #{tpu_custom_call.1} parent=5 // pred_fallthru
        _
      %p227 = scmp.le.s32.totalorder 1, %s18
      %p228 = scmp.lt.s32.totalorder %s18, 3
      %p229 = pnand %p227, %p228
      %p230 = pneg %p229
      // Predicated region
      $region37: #{tpu_custom_call.1} parent=5 // pred_check
        _
      $region38: #{tpu_custom_call.1} parent=5 // pred_check_branch
        %232 = sbr.rel (%p229) target = $region40
      $region39: #{tpu_custom_call.1} parent=5 // pred_region
        %s233 = ssub.s32 %s18, 1
        %s234 = sand.u32 %s31, 1
        %s235 = scalar_lea.sflag [#allocation3], %s234
        %s236 = sand.u32 %s31, 1
        %s237 = smul.addr %s236, 512
        %s238 = scalar_lea.vmem [#allocation2], %s237
        // Predicated region
        $region41: #{tpu_custom_call.1} parent=39 // pred_check
          %p239 = pneg %p44
        $region42: #{tpu_custom_call.1} parent=39 // pred_check_branch
          %241 = sbr.rel (%p239) target = $region44
        $region43: #{tpu_custom_call.1} parent=39 // pred_region
          %242 = dma.done %s235, 8192
        $region44: #{tpu_custom_call.1} parent=39 // pred_fallthru
          _
        // Predicated region
        $region45: #{tpu_custom_call.1} parent=39 // pred_check
          %p243 = pneg %p65
        $region46: #{tpu_custom_call.1} parent=39 // pred_check_branch
          %245 = sbr.rel (%p243) target = $region48
        $region47: #{tpu_custom_call.1} parent=39 // pred_region
          %246 = dma.done [#allocation6], 8192
        $region48: #{tpu_custom_call.1} parent=39 // pred_fallthru
          _
        // Predicated region
        $region49: #{tpu_custom_call.1} parent=39 // pred_check
          %p247 = pneg %p107
        $region50: #{tpu_custom_call.1} parent=39 // pred_check_branch
          %249 = sbr.rel (%p247) target = $region52
        $region51: #{tpu_custom_call.1} parent=39 // pred_region
          %250 = dma.done [#allocation6], 8192
        $region52: #{tpu_custom_call.1} parent=39 // pred_fallthru
          _
        %s251 = sand.u32 %s31, 1
        %s252 = scalar_lea.sflag [#allocation3], %s251
        %s253 = sand.u32 %s31, 1
        %s254 = smul.addr %s253, 512
        %s255 = scalar_lea.vmem [#allocation2], %s254
        %p256 = pneg %p44
        %p257 = pneg %p41
        %p258 = pneg %p65
        %p259 = pneg %p62
        %p260 = pneg %p86
        %p261 = pneg %p83
        %p262 = pneg %p107
        %p263 = pneg %p104
        %p264 = pneg %p128
        %p265 = pneg %p125
        %p266 = pneg %p154
        %p267 = pneg %p151
        %s268 = sand.u32 %s141, 1
        %s269 = scalar_lea.sflag [#allocation4], %s268
        %s270 = sand.u32 %s141, 1
        %s271 = smul.addr %s270, 512
        %s272 = scalar_lea.vmem [#allocation8], %s271
        %s273 = smul.u32 32, %s23
        %s274 = smul.u32 32, %s23
        %v275 = vld [vmem:[%s238] sm:$0xff]
        %v276 = vld [vmem:[%s238 + $0x8] sm:$0xff]
        %v277 = vld [vmem:[%s238 + $0x10] sm:$0xff]
        %v278 = vld [vmem:[%s238 + $0x18] sm:$0xff]
        %v279 = vld [vmem:[%s238 + $0x20] sm:$0xff]
        %v280 = vld [vmem:[%s238 + $0x28] sm:$0xff]
        %v281 = vld [vmem:[%s238 + $0x30] sm:$0xff]
        %v282 = vld [vmem:[%s238 + $0x38] sm:$0xff]
        %v283 = vld [vmem:[%s238 + $0x40] sm:$0xff]
        %v284 = vld [vmem:[%s238 + $0x48] sm:$0xff]
        %v285 = vld [vmem:[%s238 + $0x50] sm:$0xff]
        %v286 = vld [vmem:[%s238 + $0x58] sm:$0xff]
        %v287 = vld [vmem:[%s238 + $0x60] sm:$0xff]
        %v288 = vld [vmem:[%s238 + $0x68] sm:$0xff]
        %v289 = vld [vmem:[%s238 + $0x70] sm:$0xff]
        %v290 = vld [vmem:[%s238 + $0x78] sm:$0xff]
        %v291 = vld [vmem:[%s238 + $0x80] sm:$0xff]
        %v292 = vld [vmem:[%s238 + $0x88] sm:$0xff]
        %v293 = vld [vmem:[%s238 + $0x90] sm:$0xff]
        %v294 = vld [vmem:[%s238 + $0x98] sm:$0xff]
        %v295 = vld [vmem:[%s238 + $0xa0] sm:$0xff]
        %v296 = vld [vmem:[%s238 + $0xa8] sm:$0xff]
        %v297 = vld [vmem:[%s238 + $0xb0] sm:$0xff]
        %v298 = vld [vmem:[%s238 + $0xb8] sm:$0xff]
        %v299 = vld [vmem:[%s238 + $0xc0] sm:$0xff]
        %v300 = vld [vmem:[%s238 + $0xc8] sm:$0xff]
        %v301 = vld [vmem:[%s238 + $0xd0] sm:$0xff]
        %v302 = vld [vmem:[%s238 + $0xd8] sm:$0xff]
        %v303 = vld [vmem:[%s238 + $0xe0] sm:$0xff]
        %v304 = vld [vmem:[%s238 + $0xe8] sm:$0xff]
        %v305 = vld [vmem:[%s238 + $0xf0] sm:$0xff]
        %v306 = vld [vmem:[%s238 + $0xf8] sm:$0xff]
        %v307 = vld [vmem:[%s238 + $0x100] sm:$0xff]
        %v308 = vld [vmem:[%s238 + $0x108] sm:$0xff]
        %v309 = vld [vmem:[%s238 + $0x110] sm:$0xff]
        %v310 = vld [vmem:[%s238 + $0x118] sm:$0xff]
        %v311 = vld [vmem:[%s238 + $0x120] sm:$0xff]
        %v312 = vld [vmem:[%s238 + $0x128] sm:$0xff]
        %v313 = vld [vmem:[%s238 + $0x130] sm:$0xff]
        %v314 = vld [vmem:[%s238 + $0x138] sm:$0xff]
        %v315 = vld [vmem:[%s238 + $0x140] sm:$0xff]
        %v316 = vld [vmem:[%s238 + $0x148] sm:$0xff]
        %v317 = vld [vmem:[%s238 + $0x150] sm:$0xff]
        %v318 = vld [vmem:[%s238 + $0x158] sm:$0xff]
        %v319 = vld [vmem:[%s238 + $0x160] sm:$0xff]
        %v320 = vld [vmem:[%s238 + $0x168] sm:$0xff]
        %v321 = vld [vmem:[%s238 + $0x170] sm:$0xff]
        %v322 = vld [vmem:[%s238 + $0x178] sm:$0xff]
        %v323 = vld [vmem:[%s238 + $0x180] sm:$0xff]
        %v324 = vld [vmem:[%s238 + $0x188] sm:$0xff]
        %v325 = vld [vmem:[%s238 + $0x190] sm:$0xff]
        %v326 = vld [vmem:[%s238 + $0x198] sm:$0xff]
        %v327 = vld [vmem:[%s238 + $0x1a0] sm:$0xff]
        %v328 = vld [vmem:[%s238 + $0x1a8] sm:$0xff]
        %v329 = vld [vmem:[%s238 + $0x1b0] sm:$0xff]
        %v330 = vld [vmem:[%s238 + $0x1b8] sm:$0xff]
        %v331 = vld [vmem:[%s238 + $0x1c0] sm:$0xff]
        %v332 = vld [vmem:[%s238 + $0x1c8] sm:$0xff]
        %v333 = vld [vmem:[%s238 + $0x1d0] sm:$0xff]
        %v334 = vld [vmem:[%s238 + $0x1d8] sm:$0xff]
        %v335 = vld [vmem:[%s238 + $0x1e0] sm:$0xff]
        %v336 = vld [vmem:[%s238 + $0x1e8] sm:$0xff]
        %v337 = vld [vmem:[%s238 + $0x1f0] sm:$0xff]
        %v338 = vld [vmem:[%s238 + $0x1f8] sm:$0xff]
        %v339 = vld [vmem:[#allocation5] sm:$0xff]
        %v340 = vld [vmem:[#allocation5 + $0x8] sm:$0xff]
        %v341 = vld [vmem:[#allocation5 + $0x10] sm:$0xff]
        %v342 = vld [vmem:[#allocation5 + $0x18] sm:$0xff]
        %v343 = vld [vmem:[#allocation5 + $0x20] sm:$0xff]
        %v344 = vld [vmem:[#allocation5 + $0x28] sm:$0xff]
        %v345 = vld [vmem:[#allocation5 + $0x30] sm:$0xff]
        %v346 = vld [vmem:[#allocation5 + $0x38] sm:$0xff]
        %v347 = vld [vmem:[#allocation5 + $0x40] sm:$0xff]
        %v348 = vld [vmem:[#allocation5 + $0x48] sm:$0xff]
        %v349 = vld [vmem:[#allocation5 + $0x50] sm:$0xff]
        %v350 = vld [vmem:[#allocation5 + $0x58] sm:$0xff]
        %v351 = vld [vmem:[#allocation5 + $0x60] sm:$0xff]
        %v352 = vld [vmem:[#allocation5 + $0x68] sm:$0xff]
        %v353 = vld [vmem:[#allocation5 + $0x70] sm:$0xff]
        %v354 = vld [vmem:[#allocation5 + $0x78] sm:$0xff]
        %v355 = vld [vmem:[#allocation5 + $0x80] sm:$0xff]
        %v356 = vld [vmem:[#allocation5 + $0x88] sm:$0xff]
        %v357 = vld [vmem:[#allocation5 + $0x90] sm:$0xff]
        %v358 = vld [vmem:[#allocation5 + $0x98] sm:$0xff]
        %v359 = vld [vmem:[#allocation5 + $0xa0] sm:$0xff]
        %v360 = vld [vmem:[#allocation5 + $0xa8] sm:$0xff]
        %v361 = vld [vmem:[#allocation5 + $0xb0] sm:$0xff]
        %v362 = vld [vmem:[#allocation5 + $0xb8] sm:$0xff]
        %v363 = vld [vmem:[#allocation5 + $0xc0] sm:$0xff]
        %v364 = vld [vmem:[#allocation5 + $0xc8] sm:$0xff]
        %v365 = vld [vmem:[#allocation5 + $0xd0] sm:$0xff]
        %v366 = vld [vmem:[#allocation5 + $0xd8] sm:$0xff]
        %v367 = vld [vmem:[#allocation5 + $0xe0] sm:$0xff]
        %v368 = vld [vmem:[#allocation5 + $0xe8] sm:$0xff]
        %v369 = vld [vmem:[#allocation5 + $0xf0] sm:$0xff]
        %v370 = vld [vmem:[#allocation5 + $0xf8] sm:$0xff]
        %v371 = vld [vmem:[#allocation5 + $0x100] sm:$0xff]
        %v372 = vld [vmem:[#allocation5 + $0x108] sm:$0xff]
        %v373 = vld [vmem:[#allocation5 + $0x110] sm:$0xff]
        %v374 = vld [vmem:[#allocation5 + $0x118] sm:$0xff]
        %v375 = vld [vmem:[#allocation5 + $0x120] sm:$0xff]
        %v376 = vld [vmem:[#allocation5 + $0x128] sm:$0xff]
        %v377 = vld [vmem:[#allocation5 + $0x130] sm:$0xff]
        %v378 = vld [vmem:[#allocation5 + $0x138] sm:$0xff]
        %v379 = vld [vmem:[#allocation5 + $0x140] sm:$0xff]
        %v380 = vld [vmem:[#allocation5 + $0x148] sm:$0xff]
        %v381 = vld [vmem:[#allocation5 + $0x150] sm:$0xff]
        %v382 = vld [vmem:[#allocation5 + $0x158] sm:$0xff]
        %v383 = vld [vmem:[#allocation5 + $0x160] sm:$0xff]
        %v384 = vld [vmem:[#allocation5 + $0x168] sm:$0xff]
        %v385 = vld [vmem:[#allocation5 + $0x170] sm:$0xff]
        %v386 = vld [vmem:[#allocation5 + $0x178] sm:$0xff]
        %v387 = vld [vmem:[#allocation5 + $0x180] sm:$0xff]
        %v388 = vld [vmem:[#allocation5 + $0x188] sm:$0xff]
        %v389 = vld [vmem:[#allocation5 + $0x190] sm:$0xff]
        %v390 = vld [vmem:[#allocation5 + $0x198] sm:$0xff]
        %v391 = vld [vmem:[#allocation5 + $0x1a0] sm:$0xff]
        %v392 = vld [vmem:[#allocation5 + $0x1a8] sm:$0xff]
        %v393 = vld [vmem:[#allocation5 + $0x1b0] sm:$0xff]
        %v394 = vld [vmem:[#allocation5 + $0x1b8] sm:$0xff]
        %v395 = vld [vmem:[#allocation5 + $0x1c0] sm:$0xff]
        %v396 = vld [vmem:[#allocation5 + $0x1c8] sm:$0xff]
        %v397 = vld [vmem:[#allocation5 + $0x1d0] sm:$0xff]
        %v398 = vld [vmem:[#allocation5 + $0x1d8] sm:$0xff]
        %v399 = vld [vmem:[#allocation5 + $0x1e0] sm:$0xff]
        %v400 = vld [vmem:[#allocation5 + $0x1e8] sm:$0xff]
        %v401 = vld [vmem:[#allocation5 + $0x1f0] sm:$0xff]
        %v402 = vld [vmem:[#allocation5 + $0x1f8] sm:$0xff]
        %v403 = vld [vmem:[%s2] sm:$0x3]
        %v405 = vlaneseq
        %v406 = vshrl.u32 %v405, 7
        %v407 = vsub.s32 0, %v406
        %v408 = vrot.slane %v403, %v407
        %v409 = vlaneseq
        %v410 = vshrl.u32 %v409, 7
        %v411 = vsub.s32 1, %v410
        %v412 = vrot.slane %v403, %v411
        %415 = vmatprep.subr.mxu0 %v340
        %416 = vmatpush1.msra.mxu0 %v339
        %417 = vmatprep.subr.mxu0 %v342
        %418 = vmatpush1.msra.mxu0 %v341
        %419 = vmatprep.subr.mxu0 %v344
        %420 = vmatpush1.msra.mxu0 %v343
        %421 = vmatprep.subr.mxu0 %v346
        %422 = vmatpush1.msra.mxu0 %v345
        %423 = vmatprep.subr.mxu0 %v348
        %424 = vmatpush1.msra.mxu0 %v347
        %425 = vmatprep.subr.mxu0 %v350
        %426 = vmatpush1.msra.mxu0 %v349
        %427 = vmatprep.subr.mxu0 %v352
        %428 = vmatpush1.msra.mxu0 %v351
        %429 = vmatprep.subr.mxu0 %v354
        %430 = vmatpush1.msra.mxu0 %v353
        %431 = vmatprep.subr.mxu0 %v356
        %432 = vmatpush1.msra.mxu0 %v355
        %433 = vmatprep.subr.mxu0 %v358
        %434 = vmatpush1.msra.mxu0 %v357
        %435 = vmatprep.subr.mxu0 %v360
        %436 = vmatpush1.msra.mxu0 %v359
        %437 = vmatprep.subr.mxu0 %v362
        %438 = vmatpush1.msra.mxu0 %v361
        %439 = vmatprep.subr.mxu0 %v364
        %440 = vmatpush1.msra.mxu0 %v363
        %441 = vmatprep.subr.mxu0 %v366
        %442 = vmatpush1.msra.mxu0 %v365
        %443 = vmatprep.subr.mxu0 %v368
        %444 = vmatpush1.msra.mxu0 %v367
        %445 = vmatprep.subr.mxu0 %v370
        %446 = vmatpush1.msra.mxu0 %v369
        %447 = vmatprep.subr.mxu0 %v372
        %448 = vmatpush1.msra.mxu0 %v371
        %449 = vmatprep.subr.mxu0 %v374
        %450 = vmatpush1.msra.mxu0 %v373
        %451 = vmatprep.subr.mxu0 %v376
        %452 = vmatpush1.msra.mxu0 %v375
        %453 = vmatprep.subr.mxu0 %v378
        %454 = vmatpush1.msra.mxu0 %v377
        %455 = vmatprep.subr.mxu0 %v380
        %456 = vmatpush1.msra.mxu0 %v379
        %457 = vmatprep.subr.mxu0 %v382
        %458 = vmatpush1.msra.mxu0 %v381
        %459 = vmatprep.subr.mxu0 %v384
        %460 = vmatpush1.msra.mxu0 %v383
        %461 = vmatprep.subr.mxu0 %v386
        %462 = vmatpush1.msra.mxu0 %v385
        %463 = vmatprep.subr.mxu0 %v388
        %464 = vmatpush1.msra.mxu0 %v387
        %465 = vmatprep.subr.mxu0 %v390
        %466 = vmatpush1.msra.mxu0 %v389
        %467 = vmatprep.subr.mxu0 %v392
        %468 = vmatpush1.msra.mxu0 %v391
        %469 = vmatprep.subr.mxu0 %v394
        %470 = vmatpush1.msra.mxu0 %v393
        %471 = vmatprep.subr.mxu0 %v396
        %472 = vmatpush1.msra.mxu0 %v395
        %473 = vmatprep.subr.mxu0 %v398
        %474 = vmatpush1.msra.mxu0 %v397
        %475 = vmatprep.subr.mxu0 %v400
        %476 = vmatpush1.msra.mxu0 %v399
        %477 = vmatprep.subr.mxu0 %v402
        %478 = vmatpush1.msra.mxu0 %v401
        %479 = vmatprep.mubr.f32.mxu0 %v276
        %480 = vmatmul.mubr.f32.gmra.mrb[0].mxu0 %v275
        %v481 = vpop.f32.mrb[0].mxu0
        %v482 = vadd.f32 %v408, %v481
        %v483 = vpop.f32.mrb[0].mxu0
        %v484 = vadd.f32 %v412, %v483
        %485 = vmatprep.mubr.f32.mxu0 %v278
        %486 = vmatmul.mubr.f32.gmra.mrb[0].mxu0 %v277
        %v487 = vpop.f32.mrb[0].mxu0
        %v488 = vadd.f32 %v408, %v487
        %v489 = vpop.f32.mrb[0].mxu0
        %v490 = vadd.f32 %v412, %v489
        %491 = vmatprep.mubr.f32.mxu0 %v280
        %492 = vmatmul.mubr.f32.gmra.mrb[0].mxu0 %v279
        %v493 = vpop.f32.mrb[0].mxu0
        %v494 = vadd.f32 %v408, %v493
        %v495 = vpop.f32.mrb[0].mxu0
        %v496 = vadd.f32 %v412, %v495
        %497 = vmatprep.mubr.f32.mxu0 %v282
        %498 = vmatmul.mubr.f32.gmra.mrb[0].mxu0 %v281
        %v499 = vpop.f32.mrb[0].mxu0
        %v500 = vadd.f32 %v408, %v499
        %v501 = vpop.f32.mrb[0].mxu0
        %v502 = vadd.f32 %v412, %v501
        %503 = vmatprep.mubr.f32.mxu0 %v284
        %504 = vmatmul.mubr.f32.gmra.mrb[0].mxu0 %v283
        %v505 = vpop.f32.mrb[0].mxu0
        %v506 = vadd.f32 %v408, %v505
        %v507 = vpop.f32.mrb[0].mxu0
        %v508 = vadd.f32 %v412, %v507
        %509 = vmatprep.mubr.f32.mxu0 %v286
        %510 = vmatmul.mubr.f32.gmra.mrb[0].mxu0 %v285
        %v511 = vpop.f32.mrb[0].mxu0
        %v512 = vadd.f32 %v408, %v511
        %v513 = vpop.f32.mrb[0].mxu0
        %v514 = vadd.f32 %v412, %v513
        %515 = vmatprep.mubr.f32.mxu0 %v288
        %516 = vmatmul.mubr.f32.gmra.mrb[0].mxu0 %v287
        %v517 = vpop.f32.mrb[0].mxu0
        %v518 = vadd.f32 %v408, %v517
        %v519 = vpop.f32.mrb[0].mxu0
        %v520 = vadd.f32 %v412, %v519
        %521 = vmatprep.mubr.f32.mxu0 %v290
        %522 = vmatmul.mubr.f32.gmra.mrb[0].mxu0 %v289
        %v523 = vpop.f32.mrb[0].mxu0
        %v524 = vadd.f32 %v408, %v523
        %v525 = vpop.f32.mrb[0].mxu0
        %v526 = vadd.f32 %v412, %v525
        %527 = vmatprep.mubr.f32.mxu0 %v292
        %528 = vmatmul.mubr.f32.gmra.mrb[0].mxu0 %v291
        %v529 = vpop.f32.mrb[0].mxu0
        %v530 = vadd.f32 %v408, %v529
        %v531 = vpop.f32.mrb[0].mxu0
        %v532 = vadd.f32 %v412, %v531
        %533 = vmatprep.mubr.f32.mxu0 %v294
        %534 = vmatmul.mubr.f32.gmra.mrb[0].mxu0 %v293
        %v535 = vpop.f32.mrb[0].mxu0
        %v536 = vadd.f32 %v408, %v535
        %v537 = vpop.f32.mrb[0].mxu0
        %v538 = vadd.f32 %v412, %v537
        %539 = vmatprep.mubr.f32.mxu0 %v296
        %540 = vmatmul.mubr.f32.gmra.mrb[0].mxu0 %v295
        %v541 = vpop.f32.mrb[0].mxu0
        %v542 = vadd.f32 %v408, %v541
        %v543 = vpop.f32.mrb[0].mxu0
        %v544 = vadd.f32 %v412, %v543
        %545 = vmatprep.mubr.f32.mxu0 %v298
        %546 = vmatmul.mubr.f32.gmra.mrb[0].mxu0 %v297
        %v547 = vpop.f32.mrb[0].mxu0
        %v548 = vadd.f32 %v408, %v547
        %v549 = vpop.f32.mrb[0].mxu0
        %v550 = vadd.f32 %v412, %v549
        %551 = vmatprep.mubr.f32.mxu0 %v300
        %552 = vmatmul.mubr.f32.gmra.mrb[0].mxu0 %v299
        %v553 = vpop.f32.mrb[0].mxu0
        %v554 = vadd.f32 %v408, %v553
        %v555 = vpop.f32.mrb[0].mxu0
        %v556 = vadd.f32 %v412, %v555
        %557 = vmatprep.mubr.f32.mxu0 %v302
        %558 = vmatmul.mubr.f32.gmra.mrb[0].mxu0 %v301
        %v559 = vpop.f32.mrb[0].mxu0
        %v560 = vadd.f32 %v408, %v559
        %v561 = vpop.f32.mrb[0].mxu0
        %v562 = vadd.f32 %v412, %v561
        %563 = vmatprep.mubr.f32.mxu0 %v304
        %564 = vmatmul.mubr.f32.gmra.mrb[0].mxu0 %v303
        %v565 = vpop.f32.mrb[0].mxu0
        %v566 = vadd.f32 %v408, %v565
        %v567 = vpop.f32.mrb[0].mxu0
        %v568 = vadd.f32 %v412, %v567
        %569 = vmatprep.mubr.f32.mxu0 %v306
        %570 = vmatmul.mubr.f32.gmra.mrb[0].mxu0 %v305
        %v571 = vpop.f32.mrb[0].mxu0
        %v572 = vadd.f32 %v408, %v571
        %v573 = vpop.f32.mrb[0].mxu0
        %v574 = vadd.f32 %v412, %v573
        %575 = vmatprep.mubr.f32.mxu0 %v308
        %576 = vmatmul.mubr.f32.gmra.mrb[0].mxu0 %v307
        %v577 = vpop.f32.mrb[0].mxu0
        %v578 = vadd.f32 %v408, %v577
        %v579 = vpop.f32.mrb[0].mxu0
        %v580 = vadd.f32 %v412, %v579
        %581 = vmatprep.mubr.f32.mxu0 %v310
        %582 = vmatmul.mubr.f32.gmra.mrb[0].mxu0 %v309
        %v583 = vpop.f32.mrb[0].mxu0
        %v584 = vadd.f32 %v408, %v583
        %v585 = vpop.f32.mrb[0].mxu0
        %v586 = vadd.f32 %v412, %v585
        %587 = vmatprep.mubr.f32.mxu0 %v312
        %588 = vmatmul.mubr.f32.gmra.mrb[0].mxu0 %v311
        %v589 = vpop.f32.mrb[0].mxu0
        %v590 = vadd.f32 %v408, %v589
        %v591 = vpop.f32.mrb[0].mxu0
        %v592 = vadd.f32 %v412, %v591
        %593 = vmatprep.mubr.f32.mxu0 %v314
        %594 = vmatmul.mubr.f32.gmra.mrb[0].mxu0 %v313
        %v595 = vpop.f32.mrb[0].mxu0
        %v596 = vadd.f32 %v408, %v595
        %v597 = vpop.f32.mrb[0].mxu0
        %v598 = vadd.f32 %v412, %v597
        %599 = vmatprep.mubr.f32.mxu0 %v316
        %600 = vmatmul.mubr.f32.gmra.mrb[0].mxu0 %v315
        %v601 = vpop.f32.mrb[0].mxu0
        %v602 = vadd.f32 %v408, %v601
        %v603 = vpop.f32.mrb[0].mxu0
        %v604 = vadd.f32 %v412, %v603
        %605 = vmatprep.mubr.f32.mxu0 %v318
        %606 = vmatmul.mubr.f32.gmra.mrb[0].mxu0 %v317
        %v607 = vpop.f32.mrb[0].mxu0
        %v608 = vadd.f32 %v408, %v607
        %v609 = vpop.f32.mrb[0].mxu0
        %v610 = vadd.f32 %v412, %v609
        %611 = vmatprep.mubr.f32.mxu0 %v320
        %612 = vmatmul.mubr.f32.gmra.mrb[0].mxu0 %v319
        %v613 = vpop.f32.mrb[0].mxu0
        %v614 = vadd.f32 %v408, %v613
        %v615 = vpop.f32.mrb[0].mxu0
        %v616 = vadd.f32 %v412, %v615
        %617 = vmatprep.mubr.f32.mxu0 %v322
        %618 = vmatmul.mubr.f32.gmra.mrb[0].mxu0 %v321
        %v619 = vpop.f32.mrb[0].mxu0
        %v620 = vadd.f32 %v408, %v619
        %v621 = vpop.f32.mrb[0].mxu0
        %v622 = vadd.f32 %v412, %v621
        %623 = vmatprep.mubr.f32.mxu0 %v324
        %624 = vmatmul.mubr.f32.gmra.mrb[0].mxu0 %v323
        %v625 = vpop.f32.mrb[0].mxu0
        %v626 = vadd.f32 %v408, %v625
        %v627 = vpop.f32.mrb[0].mxu0
        %v628 = vadd.f32 %v412, %v627
        %629 = vmatprep.mubr.f32.mxu0 %v326
        %630 = vmatmul.mubr.f32.gmra.mrb[0].mxu0 %v325
        %v631 = vpop.f32.mrb[0].mxu0
        %v632 = vadd.f32 %v408, %v631
        %v633 = vpop.f32.mrb[0].mxu0
        %v634 = vadd.f32 %v412, %v633
        %635 = vmatprep.mubr.f32.mxu0 %v328
        %636 = vmatmul.mubr.f32.gmra.mrb[0].mxu0 %v327
        %v637 = vpop.f32.mrb[0].mxu0
        %v638 = vadd.f32 %v408, %v637
        %v639 = vpop.f32.mrb[0].mxu0
        %v640 = vadd.f32 %v412, %v639
        %641 = vmatprep.mubr.f32.mxu0 %v330
        %642 = vmatmul.mubr.f32.gmra.mrb[0].mxu0 %v329
        %v643 = vpop.f32.mrb[0].mxu0
        %v644 = vadd.f32 %v408, %v643
        %v645 = vpop.f32.mrb[0].mxu0
        %v646 = vadd.f32 %v412, %v645
        %647 = vmatprep.mubr.f32.mxu0 %v332
        %648 = vmatmul.mubr.f32.gmra.mrb[0].mxu0 %v331
        %v649 = vpop.f32.mrb[0].mxu0
        %v650 = vadd.f32 %v408, %v649
        %v651 = vpop.f32.mrb[0].mxu0
        %v652 = vadd.f32 %v412, %v651
        %653 = vmatprep.mubr.f32.mxu0 %v334
        %654 = vmatmul.mubr.f32.gmra.mrb[0].mxu0 %v333
        %v655 = vpop.f32.mrb[0].mxu0
        %v656 = vadd.f32 %v408, %v655
        %v657 = vpop.f32.mrb[0].mxu0
        %v658 = vadd.f32 %v412, %v657
        %659 = vmatprep.mubr.f32.mxu0 %v336
        %660 = vmatmul.mubr.f32.gmra.mrb[0].mxu0 %v335
        %v661 = vpop.f32.mrb[0].mxu0
        %v662 = vadd.f32 %v408, %v661
        %v663 = vpop.f32.mrb[0].mxu0
        %v664 = vadd.f32 %v412, %v663
        %665 = vmatprep.mubr.f32.mxu0 %v338
        %666 = vmatmul.mubr.f32.gmra.mrb[0].mxu0 %v337
        %v667 = vpop.f32.mrb[0].mxu0
        %v668 = vadd.f32 %v408, %v667
        %v669 = vpop.f32.mrb[0].mxu0
        %v670 = vadd.f32 %v412, %v669
        %671 = vdwg.mxu0
        %v672 = vmax.f32 %v482, 0.0
        %v673 = vmax.f32 %v484, 0.0
        %v674 = vmax.f32 %v488, 0.0
        %v675 = vmax.f32 %v490, 0.0
        %v676 = vmax.f32 %v494, 0.0
        %v677 = vmax.f32 %v496, 0.0
        %v678 = vmax.f32 %v500, 0.0
        %v679 = vmax.f32 %v502, 0.0
        %v680 = vmax.f32 %v506, 0.0
        %v681 = vmax.f32 %v508, 0.0
        %v682 = vmax.f32 %v512, 0.0
        %v683 = vmax.f32 %v514, 0.0
        %v684 = vmax.f32 %v518, 0.0
        %v685 = vmax.f32 %v520, 0.0
        %v686 = vmax.f32 %v524, 0.0
        %v687 = vmax.f32 %v526, 0.0
        %v688 = vmax.f32 %v530, 0.0
        %v689 = vmax.f32 %v532, 0.0
        %v690 = vmax.f32 %v536, 0.0
        %v691 = vmax.f32 %v538, 0.0
        %v692 = vmax.f32 %v542, 0.0
        %v693 = vmax.f32 %v544, 0.0
        %v694 = vmax.f32 %v548, 0.0
        %v695 = vmax.f32 %v550, 0.0
        %v696 = vmax.f32 %v554, 0.0
        %v697 = vmax.f32 %v556, 0.0
        %v698 = vmax.f32 %v560, 0.0
        %v699 = vmax.f32 %v562, 0.0
        %v700 = vmax.f32 %v566, 0.0
        %v701 = vmax.f32 %v568, 0.0
        %v702 = vmax.f32 %v572, 0.0
        %v703 = vmax.f32 %v574, 0.0
        %v704 = vmax.f32 %v578, 0.0
        %v705 = vmax.f32 %v580, 0.0
        %v706 = vmax.f32 %v584, 0.0
        %v707 = vmax.f32 %v586, 0.0
        %v708 = vmax.f32 %v590, 0.0
        %v709 = vmax.f32 %v592, 0.0
        %v710 = vmax.f32 %v596, 0.0
        %v711 = vmax.f32 %v598, 0.0
        %v712 = vmax.f32 %v602, 0.0
        %v713 = vmax.f32 %v604, 0.0
        %v714 = vmax.f32 %v608, 0.0
        %v715 = vmax.f32 %v610, 0.0
        %v716 = vmax.f32 %v614, 0.0
        %v717 = vmax.f32 %v616, 0.0
        %v718 = vmax.f32 %v620, 0.0
        %v719 = vmax.f32 %v622, 0.0
        %v720 = vmax.f32 %v626, 0.0
        %v721 = vmax.f32 %v628, 0.0
        %v722 = vmax.f32 %v632, 0.0
        %v723 = vmax.f32 %v634, 0.0
        %v724 = vmax.f32 %v638, 0.0
        %v725 = vmax.f32 %v640, 0.0
        %v726 = vmax.f32 %v644, 0.0
        %v727 = vmax.f32 %v646, 0.0
        %v728 = vmax.f32 %v650, 0.0
        %v729 = vmax.f32 %v652, 0.0
        %v730 = vmax.f32 %v656, 0.0
        %v731 = vmax.f32 %v658, 0.0
        %v732 = vmax.f32 %v662, 0.0
        %v733 = vmax.f32 %v664, 0.0
        %v734 = vmax.f32 %v668, 0.0
        %v735 = vmax.f32 %v670, 0.0
        %v736 = vld [vmem:[#allocation7] sm:$0xff]
        %v737 = vld [vmem:[#allocation7 + $0x8] sm:$0xff]
        %v738 = vld [vmem:[#allocation7 + $0x10] sm:$0xff]
        %v739 = vld [vmem:[#allocation7 + $0x18] sm:$0xff]
        %v740 = vld [vmem:[#allocation7 + $0x20] sm:$0xff]
        %v741 = vld [vmem:[#allocation7 + $0x28] sm:$0xff]
        %v742 = vld [vmem:[#allocation7 + $0x30] sm:$0xff]
        %v743 = vld [vmem:[#allocation7 + $0x38] sm:$0xff]
        %v744 = vld [vmem:[#allocation7 + $0x40] sm:$0xff]
        %v745 = vld [vmem:[#allocation7 + $0x48] sm:$0xff]
        %v746 = vld [vmem:[#allocation7 + $0x50] sm:$0xff]
        %v747 = vld [vmem:[#allocation7 + $0x58] sm:$0xff]
        %v748 = vld [vmem:[#allocation7 + $0x60] sm:$0xff]
        %v749 = vld [vmem:[#allocation7 + $0x68] sm:$0xff]
        %v750 = vld [vmem:[#allocation7 + $0x70] sm:$0xff]
        %v751 = vld [vmem:[#allocation7 + $0x78] sm:$0xff]
        %v752 = vld [vmem:[#allocation7 + $0x80] sm:$0xff]
        %v753 = vld [vmem:[#allocation7 + $0x88] sm:$0xff]
        %v754 = vld [vmem:[#allocation7 + $0x90] sm:$0xff]
        %v755 = vld [vmem:[#allocation7 + $0x98] sm:$0xff]
        %v756 = vld [vmem:[#allocation7 + $0xa0] sm:$0xff]
        %v757 = vld [vmem:[#allocation7 + $0xa8] sm:$0xff]
        %v758 = vld [vmem:[#allocation7 + $0xb0] sm:$0xff]
        %v759 = vld [vmem:[#allocation7 + $0xb8] sm:$0xff]
        %v760 = vld [vmem:[#allocation7 + $0xc0] sm:$0xff]
        %v761 = vld [vmem:[#allocation7 + $0xc8] sm:$0xff]
        %v762 = vld [vmem:[#allocation7 + $0xd0] sm:$0xff]
        %v763 = vld [vmem:[#allocation7 + $0xd8] sm:$0xff]
        %v764 = vld [vmem:[#allocation7 + $0xe0] sm:$0xff]
        %v765 = vld [vmem:[#allocation7 + $0xe8] sm:$0xff]
        %v766 = vld [vmem:[#allocation7 + $0xf0] sm:$0xff]
        %v767 = vld [vmem:[#allocation7 + $0xf8] sm:$0xff]
        %v768 = vld [vmem:[#allocation7 + $0x100] sm:$0xff]
        %v769 = vld [vmem:[#allocation7 + $0x108] sm:$0xff]
        %v770 = vld [vmem:[#allocation7 + $0x110] sm:$0xff]
        %v771 = vld [vmem:[#allocation7 + $0x118] sm:$0xff]
        %v772 = vld [vmem:[#allocation7 + $0x120] sm:$0xff]
        %v773 = vld [vmem:[#allocation7 + $0x128] sm:$0xff]
        %v774 = vld [vmem:[#allocation7 + $0x130] sm:$0xff]
        %v775 = vld [vmem:[#allocation7 + $0x138] sm:$0xff]
        %v776 = vld [vmem:[#allocation7 + $0x140] sm:$0xff]
        %v777 = vld [vmem:[#allocation7 + $0x148] sm:$0xff]
        %v778 = vld [vmem:[#allocation7 + $0x150] sm:$0xff]
        %v779 = vld [vmem:[#allocation7 + $0x158] sm:$0xff]
        %v780 = vld [vmem:[#allocation7 + $0x160] sm:$0xff]
        %v781 = vld [vmem:[#allocation7 + $0x168] sm:$0xff]
        %v782 = vld [vmem:[#allocation7 + $0x170] sm:$0xff]
        %v783 = vld [vmem:[#allocation7 + $0x178] sm:$0xff]
        %v784 = vld [vmem:[#allocation7 + $0x180] sm:$0xff]
        %v785 = vld [vmem:[#allocation7 + $0x188] sm:$0xff]
        %v786 = vld [vmem:[#allocation7 + $0x190] sm:$0xff]
        %v787 = vld [vmem:[#allocation7 + $0x198] sm:$0xff]
        %v788 = vld [vmem:[#allocation7 + $0x1a0] sm:$0xff]
        %v789 = vld [vmem:[#allocation7 + $0x1a8] sm:$0xff]
        %v790 = vld [vmem:[#allocation7 + $0x1b0] sm:$0xff]
        %v791 = vld [vmem:[#allocation7 + $0x1b8] sm:$0xff]
        %v792 = vld [vmem:[#allocation7 + $0x1c0] sm:$0xff]
        %v793 = vld [vmem:[#allocation7 + $0x1c8] sm:$0xff]
        %v794 = vld [vmem:[#allocation7 + $0x1d0] sm:$0xff]
        %v795 = vld [vmem:[#allocation7 + $0x1d8] sm:$0xff]
        %v796 = vld [vmem:[#allocation7 + $0x1e0] sm:$0xff]
        %v797 = vld [vmem:[#allocation7 + $0x1e8] sm:$0xff]
        %v798 = vld [vmem:[#allocation7 + $0x1f0] sm:$0xff]
        %v799 = vld [vmem:[#allocation7 + $0x1f8] sm:$0xff]
        %v800 = vld [vmem:[%s4] sm:$0x3]
        %v802 = vlaneseq
        %v803 = vshrl.u32 %v802, 7
        %v804 = vsub.s32 0, %v803
        %v805 = vrot.slane %v800, %v804
        %v806 = vlaneseq
        %v807 = vshrl.u32 %v806, 7
        %v808 = vsub.s32 1, %v807
        %v809 = vrot.slane %v800, %v808
        %812 = vmatprep.subr.mxu0 %v737
        %813 = vmatpush1.msra.mxu0 %v736
        %814 = vmatprep.subr.mxu0 %v739
        %815 = vmatpush1.msra.mxu0 %v738
        %816 = vmatprep.subr.mxu0 %v741
        %817 = vmatpush1.msra.mxu0 %v740
        %818 = vmatprep.subr.mxu0 %v743
        %819 = vmatpush1.msra.mxu0 %v742
        %820 = vmatprep.subr.mxu0 %v745
        %821 = vmatpush1.msra.mxu0 %v744
        %822 = vmatprep.subr.mxu0 %v747
        %823 = vmatpush1.msra.mxu0 %v746
        %824 = vmatprep.subr.mxu0 %v749
        %825 = vmatpush1.msra.mxu0 %v748
        %826 = vmatprep.subr.mxu0 %v751
        %827 = vmatpush1.msra.mxu0 %v750
        %828 = vmatprep.subr.mxu0 %v753
        %829 = vmatpush1.msra.mxu0 %v752
        %830 = vmatprep.subr.mxu0 %v755
        %831 = vmatpush1.msra.mxu0 %v754
        %832 = vmatprep.subr.mxu0 %v757
        %833 = vmatpush1.msra.mxu0 %v756
        %834 = vmatprep.subr.mxu0 %v759
        %835 = vmatpush1.msra.mxu0 %v758
        %836 = vmatprep.subr.mxu0 %v761
        %837 = vmatpush1.msra.mxu0 %v760
        %838 = vmatprep.subr.mxu0 %v763
        %839 = vmatpush1.msra.mxu0 %v762
        %840 = vmatprep.subr.mxu0 %v765
        %841 = vmatpush1.msra.mxu0 %v764
        %842 = vmatprep.subr.mxu0 %v767
        %843 = vmatpush1.msra.mxu0 %v766
        %844 = vmatprep.subr.mxu0 %v769
        %845 = vmatpush1.msra.mxu0 %v768
        %846 = vmatprep.subr.mxu0 %v771
        %847 = vmatpush1.msra.mxu0 %v770
        %848 = vmatprep.subr.mxu0 %v773
        %849 = vmatpush1.msra.mxu0 %v772
        %850 = vmatprep.subr.mxu0 %v775
        %851 = vmatpush1.msra.mxu0 %v774
        %852 = vmatprep.subr.mxu0 %v777
        %853 = vmatpush1.msra.mxu0 %v776
        %854 = vmatprep.subr.mxu0 %v779
        %855 = vmatpush1.msra.mxu0 %v778
        %856 = vmatprep.subr.mxu0 %v781
        %857 = vmatpush1.msra.mxu0 %v780
        %858 = vmatprep.subr.mxu0 %v783
        %859 = vmatpush1.msra.mxu0 %v782
        %860 = vmatprep.subr.mxu0 %v785
        %861 = vmatpush1.msra.mxu0 %v784
        %862 = vmatprep.subr.mxu0 %v787
        %863 = vmatpush1.msra.mxu0 %v786
        %864 = vmatprep.subr.mxu0 %v789
        %865 = vmatpush1.msra.mxu0 %v788
        %866 = vmatprep.subr.mxu0 %v791
        %867 = vmatpush1.msra.mxu0 %v790
        %868 = vmatprep.subr.mxu0 %v793
        %869 = vmatpush1.msra.mxu0 %v792
        %870 = vmatprep.subr.mxu0 %v795
        %871 = vmatpush1.msra.mxu0 %v794
        %872 = vmatprep.subr.mxu0 %v797
        %873 = vmatpush1.msra.mxu0 %v796
        %874 = vmatprep.subr.mxu0 %v799
        %875 = vmatpush1.msra.mxu0 %v798
        %876 = vmatprep.mubr.f32.mxu0 %v673
        %877 = vmatmul.mubr.f32.gmra.mrb[0].mxu0 %v672
        %v878 = vpop.f32.mrb[0].mxu0
        %v879 = vadd.f32 %v805, %v878
        %v880 = vpop.f32.mrb[0].mxu0
        %v881 = vadd.f32 %v809, %v880
        %882 = vmatprep.mubr.f32.mxu0 %v675
        %883 = vmatmul.mubr.f32.gmra.mrb[0].mxu0 %v674
        %v884 = vpop.f32.mrb[0].mxu0
        %v885 = vadd.f32 %v805, %v884
        %v886 = vpop.f32.mrb[0].mxu0
        %v887 = vadd.f32 %v809, %v886
        %888 = vmatprep.mubr.f32.mxu0 %v677
        %889 = vmatmul.mubr.f32.gmra.mrb[0].mxu0 %v676
        %v890 = vpop.f32.mrb[0].mxu0
        %v891 = vadd.f32 %v805, %v890
        %v892 = vpop.f32.mrb[0].mxu0
        %v893 = vadd.f32 %v809, %v892
        %894 = vmatprep.mubr.f32.mxu0 %v679
        %895 = vmatmul.mubr.f32.gmra.mrb[0].mxu0 %v678
        %v896 = vpop.f32.mrb[0].mxu0
        %v897 = vadd.f32 %v805, %v896
        %v898 = vpop.f32.mrb[0].mxu0
        %v899 = vadd.f32 %v809, %v898
        %900 = vmatprep.mubr.f32.mxu0 %v681
        %901 = vmatmul.mubr.f32.gmra.mrb[0].mxu0 %v680
        %v902 = vpop.f32.mrb[0].mxu0
        %v903 = vadd.f32 %v805, %v902
        %v904 = vpop.f32.mrb[0].mxu0
        %v905 = vadd.f32 %v809, %v904
        %906 = vmatprep.mubr.f32.mxu0 %v683
        %907 = vmatmul.mubr.f32.gmra.mrb[0].mxu0 %v682
        %v908 = vpop.f32.mrb[0].mxu0
        %v909 = vadd.f32 %v805, %v908
        %v910 = vpop.f32.mrb[0].mxu0
        %v911 = vadd.f32 %v809, %v910
        %912 = vmatprep.mubr.f32.mxu0 %v685
        %913 = vmatmul.mubr.f32.gmra.mrb[0].mxu0 %v684
        %v914 = vpop.f32.mrb[0].mxu0
        %v915 = vadd.f32 %v805, %v914
        %v916 = vpop.f32.mrb[0].mxu0
        %v917 = vadd.f32 %v809, %v916
        %918 = vmatprep.mubr.f32.mxu0 %v687
        %919 = vmatmul.mubr.f32.gmra.mrb[0].mxu0 %v686
        %v920 = vpop.f32.mrb[0].mxu0
        %v921 = vadd.f32 %v805, %v920
        %v922 = vpop.f32.mrb[0].mxu0
        %v923 = vadd.f32 %v809, %v922
        %924 = vmatprep.mubr.f32.mxu0 %v689
        %925 = vmatmul.mubr.f32.gmra.mrb[0].mxu0 %v688
        %v926 = vpop.f32.mrb[0].mxu0
        %v927 = vadd.f32 %v805, %v926
        %v928 = vpop.f32.mrb[0].mxu0
        %v929 = vadd.f32 %v809, %v928
        %930 = vmatprep.mubr.f32.mxu0 %v691
        %931 = vmatmul.mubr.f32.gmra.mrb[0].mxu0 %v690
        %v932 = vpop.f32.mrb[0].mxu0
        %v933 = vadd.f32 %v805, %v932
        %v934 = vpop.f32.mrb[0].mxu0
        %v935 = vadd.f32 %v809, %v934
        %936 = vmatprep.mubr.f32.mxu0 %v693
        %937 = vmatmul.mubr.f32.gmra.mrb[0].mxu0 %v692
        %v938 = vpop.f32.mrb[0].mxu0
        %v939 = vadd.f32 %v805, %v938
        %v940 = vpop.f32.mrb[0].mxu0
        %v941 = vadd.f32 %v809, %v940
        %942 = vmatprep.mubr.f32.mxu0 %v695
        %943 = vmatmul.mubr.f32.gmra.mrb[0].mxu0 %v694
        %v944 = vpop.f32.mrb[0].mxu0
        %v945 = vadd.f32 %v805, %v944
        %v946 = vpop.f32.mrb[0].mxu0
        %v947 = vadd.f32 %v809, %v946
        %948 = vmatprep.mubr.f32.mxu0 %v697
        %949 = vmatmul.mubr.f32.gmra.mrb[0].mxu0 %v696
        %v950 = vpop.f32.mrb[0].mxu0
        %v951 = vadd.f32 %v805, %v950
        %v952 = vpop.f32.mrb[0].mxu0
        %v953 = vadd.f32 %v809, %v952
        %954 = vmatprep.mubr.f32.mxu0 %v699
        %955 = vmatmul.mubr.f32.gmra.mrb[0].mxu0 %v698
        %v956 = vpop.f32.mrb[0].mxu0
        %v957 = vadd.f32 %v805, %v956
        %v958 = vpop.f32.mrb[0].mxu0
        %v959 = vadd.f32 %v809, %v958
        %960 = vmatprep.mubr.f32.mxu0 %v701
        %961 = vmatmul.mubr.f32.gmra.mrb[0].mxu0 %v700
        %v962 = vpop.f32.mrb[0].mxu0
        %v963 = vadd.f32 %v805, %v962
        %v964 = vpop.f32.mrb[0].mxu0
        %v965 = vadd.f32 %v809, %v964
        %966 = vmatprep.mubr.f32.mxu0 %v703
        %967 = vmatmul.mubr.f32.gmra.mrb[0].mxu0 %v702
        %v968 = vpop.f32.mrb[0].mxu0
        %v969 = vadd.f32 %v805, %v968
        %v970 = vpop.f32.mrb[0].mxu0
        %v971 = vadd.f32 %v809, %v970
        %972 = vmatprep.mubr.f32.mxu0 %v705
        %973 = vmatmul.mubr.f32.gmra.mrb[0].mxu0 %v704
        %v974 = vpop.f32.mrb[0].mxu0
        %v975 = vadd.f32 %v805, %v974
        %v976 = vpop.f32.mrb[0].mxu0
        %v977 = vadd.f32 %v809, %v976
        %978 = vmatprep.mubr.f32.mxu0 %v707
        %979 = vmatmul.mubr.f32.gmra.mrb[0].mxu0 %v706
        %v980 = vpop.f32.mrb[0].mxu0
        %v981 = vadd.f32 %v805, %v980
        %v982 = vpop.f32.mrb[0].mxu0
        %v983 = vadd.f32 %v809, %v982
        %984 = vmatprep.mubr.f32.mxu0 %v709
        %985 = vmatmul.mubr.f32.gmra.mrb[0].mxu0 %v708
        %v986 = vpop.f32.mrb[0].mxu0
        %v987 = vadd.f32 %v805, %v986
        %v988 = vpop.f32.mrb[0].mxu0
        %v989 = vadd.f32 %v809, %v988
        %990 = vmatprep.mubr.f32.mxu0 %v711
        %991 = vmatmul.mubr.f32.gmra.mrb[0].mxu0 %v710
        %v992 = vpop.f32.mrb[0].mxu0
        %v993 = vadd.f32 %v805, %v992
        %v994 = vpop.f32.mrb[0].mxu0
        %v995 = vadd.f32 %v809, %v994
        %996 = vmatprep.mubr.f32.mxu0 %v713
        %997 = vmatmul.mubr.f32.gmra.mrb[0].mxu0 %v712
        %v998 = vpop.f32.mrb[0].mxu0
        %v999 = vadd.f32 %v805, %v998
        %v1000 = vpop.f32.mrb[0].mxu0
        %v1001 = vadd.f32 %v809, %v1000
        %1002 = vmatprep.mubr.f32.mxu0 %v715
        %1003 = vmatmul.mubr.f32.gmra.mrb[0].mxu0 %v714
        %v1004 = vpop.f32.mrb[0].mxu0
        %v1005 = vadd.f32 %v805, %v1004
        %v1006 = vpop.f32.mrb[0].mxu0
        %v1007 = vadd.f32 %v809, %v1006
        %1008 = vmatprep.mubr.f32.mxu0 %v717
        %1009 = vmatmul.mubr.f32.gmra.mrb[0].mxu0 %v716
        %v1010 = vpop.f32.mrb[0].mxu0
        %v1011 = vadd.f32 %v805, %v1010
        %v1012 = vpop.f32.mrb[0].mxu0
        %v1013 = vadd.f32 %v809, %v1012
        %1014 = vmatprep.mubr.f32.mxu0 %v719
        %1015 = vmatmul.mubr.f32.gmra.mrb[0].mxu0 %v718
        %v1016 = vpop.f32.mrb[0].mxu0
        %v1017 = vadd.f32 %v805, %v1016
        %v1018 = vpop.f32.mrb[0].mxu0
        %v1019 = vadd.f32 %v809, %v1018
        %1020 = vmatprep.mubr.f32.mxu0 %v721
        %1021 = vmatmul.mubr.f32.gmra.mrb[0].mxu0 %v720
        %v1022 = vpop.f32.mrb[0].mxu0
        %v1023 = vadd.f32 %v805, %v1022
        %v1024 = vpop.f32.mrb[0].mxu0
        %v1025 = vadd.f32 %v809, %v1024
        %1026 = vmatprep.mubr.f32.mxu0 %v723
        %1027 = vmatmul.mubr.f32.gmra.mrb[0].mxu0 %v722
        %v1028 = vpop.f32.mrb[0].mxu0
        %v1029 = vadd.f32 %v805, %v1028
        %v1030 = vpop.f32.mrb[0].mxu0
        %v1031 = vadd.f32 %v809, %v1030
        %1032 = vmatprep.mubr.f32.mxu0 %v725
        %1033 = vmatmul.mubr.f32.gmra.mrb[0].mxu0 %v724
        %v1034 = vpop.f32.mrb[0].mxu0
        %v1035 = vadd.f32 %v805, %v1034
        %v1036 = vpop.f32.mrb[0].mxu0
        %v1037 = vadd.f32 %v809, %v1036
        %1038 = vmatprep.mubr.f32.mxu0 %v727
        %1039 = vmatmul.mubr.f32.gmra.mrb[0].mxu0 %v726
        %v1040 = vpop.f32.mrb[0].mxu0
        %v1041 = vadd.f32 %v805, %v1040
        %v1042 = vpop.f32.mrb[0].mxu0
        %v1043 = vadd.f32 %v809, %v1042
        %1044 = vmatprep.mubr.f32.mxu0 %v729
        %1045 = vmatmul.mubr.f32.gmra.mrb[0].mxu0 %v728
        %v1046 = vpop.f32.mrb[0].mxu0
        %v1047 = vadd.f32 %v805, %v1046
        %v1048 = vpop.f32.mrb[0].mxu0
        %v1049 = vadd.f32 %v809, %v1048
        %1050 = vmatprep.mubr.f32.mxu0 %v731
        %1051 = vmatmul.mubr.f32.gmra.mrb[0].mxu0 %v730
        %v1052 = vpop.f32.mrb[0].mxu0
        %v1053 = vadd.f32 %v805, %v1052
        %v1054 = vpop.f32.mrb[0].mxu0
        %v1055 = vadd.f32 %v809, %v1054
        %1056 = vmatprep.mubr.f32.mxu0 %v733
        %1057 = vmatmul.mubr.f32.gmra.mrb[0].mxu0 %v732
        %v1058 = vpop.f32.mrb[0].mxu0
        %v1059 = vadd.f32 %v805, %v1058
        %v1060 = vpop.f32.mrb[0].mxu0
        %v1061 = vadd.f32 %v809, %v1060
        %1062 = vmatprep.mubr.f32.mxu0 %v735
        %1063 = vmatmul.mubr.f32.gmra.mrb[0].mxu0 %v734
        %v1064 = vpop.f32.mrb[0].mxu0
        %v1065 = vadd.f32 %v805, %v1064
        %v1066 = vpop.f32.mrb[0].mxu0
        %v1067 = vadd.f32 %v809, %v1066
        %1068 = vdwg.mxu0
        %1069 = vst [vmem:[%s272] sm:$0xff] %v879
        %1070 = vst [vmem:[%s272 + $0x8] sm:$0xff] %v881
        %1071 = vst [vmem:[%s272 + $0x10] sm:$0xff] %v885
        %1072 = vst [vmem:[%s272 + $0x18] sm:$0xff] %v887
        %1073 = vst [vmem:[%s272 + $0x20] sm:$0xff] %v891
        %1074 = vst [vmem:[%s272 + $0x28] sm:$0xff] %v893
        %1075 = vst [vmem:[%s272 + $0x30] sm:$0xff] %v897
        %1076 = vst [vmem:[%s272 + $0x38] sm:$0xff] %v899
        %1077 = vst [vmem:[%s272 + $0x40] sm:$0xff] %v903
        %1078 = vst [vmem:[%s272 + $0x48] sm:$0xff] %v905
        %1079 = vst [vmem:[%s272 + $0x50] sm:$0xff] %v909
        %1080 = vst [vmem:[%s272 + $0x58] sm:$0xff] %v911
        %1081 = vst [vmem:[%s272 + $0x60] sm:$0xff] %v915
        %1082 = vst [vmem:[%s272 + $0x68] sm:$0xff] %v917
        %1083 = vst [vmem:[%s272 + $0x70] sm:$0xff] %v921
        %1084 = vst [vmem:[%s272 + $0x78] sm:$0xff] %v923
        %1085 = vst [vmem:[%s272 + $0x80] sm:$0xff] %v927
        %1086 = vst [vmem:[%s272 + $0x88] sm:$0xff] %v929
        %1087 = vst [vmem:[%s272 + $0x90] sm:$0xff] %v933
        %1088 = vst [vmem:[%s272 + $0x98] sm:$0xff] %v935
        %1089 = vst [vmem:[%s272 + $0xa0] sm:$0xff] %v939
        %1090 = vst [vmem:[%s272 + $0xa8] sm:$0xff] %v941
        %1091 = vst [vmem:[%s272 + $0xb0] sm:$0xff] %v945
        %1092 = vst [vmem:[%s272 + $0xb8] sm:$0xff] %v947
        %1093 = vst [vmem:[%s272 + $0xc0] sm:$0xff] %v951
        %1094 = vst [vmem:[%s272 + $0xc8] sm:$0xff] %v953
        %1095 = vst [vmem:[%s272 + $0xd0] sm:$0xff] %v957
        %1096 = vst [vmem:[%s272 + $0xd8] sm:$0xff] %v959
        %1097 = vst [vmem:[%s272 + $0xe0] sm:$0xff] %v963
        %1098 = vst [vmem:[%s272 + $0xe8] sm:$0xff] %v965
        %1099 = vst [vmem:[%s272 + $0xf0] sm:$0xff] %v969
        %1100 = vst [vmem:[%s272 + $0xf8] sm:$0xff] %v971
        %1101 = vst [vmem:[%s272 + $0x100] sm:$0xff] %v975
        %1102 = vst [vmem:[%s272 + $0x108] sm:$0xff] %v977
        %1103 = vst [vmem:[%s272 + $0x110] sm:$0xff] %v981
        %1104 = vst [vmem:[%s272 + $0x118] sm:$0xff] %v983
        %1105 = vst [vmem:[%s272 + $0x120] sm:$0xff] %v987
        %1106 = vst [vmem:[%s272 + $0x128] sm:$0xff] %v989
        %1107 = vst [vmem:[%s272 + $0x130] sm:$0xff] %v993
        %1108 = vst [vmem:[%s272 + $0x138] sm:$0xff] %v995
        %1109 = vst [vmem:[%s272 + $0x140] sm:$0xff] %v999
        %1110 = vst [vmem:[%s272 + $0x148] sm:$0xff] %v1001
        %1111 = vst [vmem:[%s272 + $0x150] sm:$0xff] %v1005
        %1112 = vst [vmem:[%s272 + $0x158] sm:$0xff] %v1007
        %1113 = vst [vmem:[%s272 + $0x160] sm:$0xff] %v1011
        %1114 = vst [vmem:[%s272 + $0x168] sm:$0xff] %v1013
        %1115 = vst [vmem:[%s272 + $0x170] sm:$0xff] %v1017
        %1116 = vst [vmem:[%s272 + $0x178] sm:$0xff] %v1019
        %1117 = vst [vmem:[%s272 + $0x180] sm:$0xff] %v1023
        %1118 = vst [vmem:[%s272 + $0x188] sm:$0xff] %v1025
        %1119 = vst [vmem:[%s272 + $0x190] sm:$0xff] %v1029
        %1120 = vst [vmem:[%s272 + $0x198] sm:$0xff] %v1031
        %1121 = vst [vmem:[%s272 + $0x1a0] sm:$0xff] %v1035
        %1122 = vst [vmem:[%s272 + $0x1a8] sm:$0xff] %v1037
        %1123 = vst [vmem:[%s272 + $0x1b0] sm:$0xff] %v1041
        %1124 = vst [vmem:[%s272 + $0x1b8] sm:$0xff] %v1043
        %1125 = vst [vmem:[%s272 + $0x1c0] sm:$0xff] %v1047
        %1126 = vst [vmem:[%s272 + $0x1c8] sm:$0xff] %v1049
        %1127 = vst [vmem:[%s272 + $0x1d0] sm:$0xff] %v1053
        %1128 = vst [vmem:[%s272 + $0x1d8] sm:$0xff] %v1055
        %1129 = vst [vmem:[%s272 + $0x1e0] sm:$0xff] %v1059
        %1130 = vst [vmem:[%s272 + $0x1e8] sm:$0xff] %v1061
        %1131 = vst [vmem:[%s272 + $0x1f0] sm:$0xff] %v1065
        %1132 = vst [vmem:[%s272 + $0x1f8] sm:$0xff] %v1067
        %s1133 = sand.u32 %s141, 1
        %s1134 = scalar_lea.sflag [#allocation4], %s1133
        %s1135 = sand.u32 %s141, 1
        %s1136 = smul.addr %s1135, 512
        %s1137 = scalar_lea.vmem [#allocation8], %s1136
        // Predicated region
        $region53: #{tpu_custom_call.1} parent=39 // pred_check
          %p1138 = pneg %p151
        $region54: #{tpu_custom_call.1} parent=39 // pred_check_branch
          %1140 = sbr.rel (%p1138) target = $region56
        $region55: #{tpu_custom_call.1} parent=39 // pred_region
          %s1141 = smul.u32 32, %s23
          %s1143 = ssub.s32 8192, 8192
          %1144 = vsyncadd %s1134, %s1143
          %s1145 = smul.addr %s1141, 2
          %s1146 = smul.addr %s1145, 128
          %s1147 = scalar_lea.hbm %s5, %s1146
          %s1148 = sshll.u32 %s1137, 4
          %s1149 = int_to_ptr.vmem [resolvable:$true] %s1148
          %1154 = dma.vmem_to_hbm [thread:$0]  %s1149, 8192, %s1147, %s1134, 256, 256, 16
        $region56: #{tpu_custom_call.1} parent=39 // pred_fallthru
          _
      $region40: #{tpu_custom_call.1} parent=5 // pred_fallthru
        _
      %p1155 = scmp.le.s32.totalorder 2, %s18
      // Predicated region
      $region57: #{tpu_custom_call.1} parent=5 // pred_check
        %p1156 = pneg %p1155
      $region58: #{tpu_custom_call.1} parent=5 // pred_check_branch
        %1158 = sbr.rel (%p1156) target = $region60
      $region59: #{tpu_custom_call.1} parent=5 // pred_region
        %s1159 = ssub.s32 %s18, 2
        // Predicated region
        $region61: #{tpu_custom_call.1} parent=59 // pred_check
          %p1160 = pneg %p157
        $region62: #{tpu_custom_call.1} parent=59 // pred_check_branch
          %1162 = sbr.rel (%p1160) target = $region64
        $region63: #{tpu_custom_call.1} parent=59 // pred_region
          %s1163 = sand.u32 %s142, 1
          %s1164 = scalar_lea.sflag [#allocation4], %s1163
          %s1165 = sand.u32 %s142, 1
          %s1166 = smul.addr %s1165, 512
          %s1167 = scalar_lea.vmem [#allocation8], %s1166
          %1168 = dma.done %s1164, 8192
        $region64: #{tpu_custom_call.1} parent=59 // pred_fallthru
          _
      $region60: #{tpu_custom_call.1} parent=5 // pred_fallthru
        _
    $region6: #{tpu_custom_call.1} parent=1 // loop_footer
      %s22 = sadd.s32 1, %s18
    $region7: #{tpu_custom_call.1} parent=1 // loop_footer_branch
      %17 = sbr.rel target = $region3
    $region8: #{tpu_custom_call.1} parent=1 // loop_exit
      _
    %1169 = vsyncpa [#allocation3], 1
    %s1170 = scalar_lea.sflag [#allocation3], 1
    %1171 = vsyncpa %s1170, 1
    %1172 = vsyncpa [#allocation6], 1
    %1173 = vsyncpa [#allocation4], 1
    %s1174 = scalar_lea.sflag [#allocation4], 1
    %1175 = vsyncpa %s1174, 1

// kernel: tpu_custom_call.1
$region0: #{tpu_custom_call.1}
  #allocation0 [shape = 'u32[]', space=smem, size = 0x4, offset = 0x4, fixed_abs, tag = 'smem constant byte address 0x4 - core index']
  #allocation1 [shape = 'u32[144,128]{1,0:T(1,128)}', space=vmem, size = 0x12000, scoped, tag = 'internal scratch']
  %s0 = inlined_call_operand.hbm [shape: f32[512,256], index: 0, kind: input, shape index: {}]
  %s1 = inlined_call_operand.hbm [shape: f32[256,256], index: 1, kind: input, shape index: {}]
  %s2 = inlined_call_operand.vmem [shape: f32[1,256], index: 2, kind: input, shape index: {}]
  %s3 = inlined_call_operand.hbm [shape: f32[256,256], index: 3, kind: input, shape index: {}]
  %s4 = inlined_call_operand.vmem [shape: f32[1,256], index: 4, kind: input, shape index: {}]
  %s5 = inlined_call_operand.hbm [shape: f32[512,256], index: 5, kind: output, shape index: {}]
  %s6 = sld [smem:[#allocation0]]
  $region65: #{tpu_custom_call.1} parent=0
    _
  %s8 = ssub.s32 1, %s6
  %s9 = scalar_select 0, %s8, %s6
  $region1: #{tpu_custom_call.1} parent=0
    #allocation2 [shape = 'u8[524288]{0}', space=vmem, size = 0x80000, scoped, tag = 'input window, operand 0']
    #allocation3 [shape = 's32[2]{0}', space=sflag, size = 0x8, scoped, tag = 'scoped memory for tpu_custom_call.1']
    #allocation4 [shape = 's32[2]{0}', space=sflag, size = 0x8, scoped, tag = 'scoped memory for tpu_custom_call.1']
    #allocation5 [shape = 'u8[262144]{0}', space=vmem, size = 0x40000, scoped, tag = 'input window, operand 1, single buffered']
    #allocation6 [shape = 's32[1]{0}', space=sflag, size = 0x4, scoped, tag = 'scoped memory for tpu_custom_call.1']
    #allocation7 [shape = 'u8[262144]{0}', space=vmem, size = 0x40000, scoped, tag = 'input window, operand 3, single buffered']
    #allocation8 [shape = 'u8[524288]{0}', space=vmem, size = 0x80000, scoped, tag = 'output window, operand 0']
    %10 = vsyncpa [#allocation3], 0
    %s11 = scalar_lea.sflag [#allocation3], 1
    %12 = vsyncpa %s11, 0
    %13 = vsyncpa [#allocation6], 0
    %14 = vsyncpa [#allocation4], 0
    %s15 = scalar_lea.sflag [#allocation4], 1
    %16 = vsyncpa %s15, 0
    loop: start=0, step=1, limit=4
    $region2: #{tpu_custom_call.1} parent=1 // loop_pre_header
      _
    $region3: #{tpu_custom_call.1} parent=1 // loop_header
      %s18 = sphi 0, %s22
      %p19 = scmp.ge.s32.totalorder %s18, 4
      %s28 = sphi 0, %s30
      %s31 = sphi 0, %s28
      %s32 = sphi 0, %s31
      %s48 = sphi 0, %s32
      %s52 = sphi 0, %s52
      %s54 = sphi 0, %s52
      %s55 = sphi 0, %s54
      %s69 = sphi 0, %s55
      %s73 = sphi 0, %s73
      %s75 = sphi 0, %s73
      %s76 = sphi 0, %s75
      %s90 = sphi 0, %s76
      %s94 = sphi 0, %s94
      %s96 = sphi 0, %s94
      %s97 = sphi 0, %s96
      %s111 = sphi 0, %s97
      %s115 = sphi 0, %s115
      %s117 = sphi 0, %s115
      %s118 = sphi 0, %s117
      %s132 = sphi 0, %s118
      %s138 = sphi 0, %s140
      %s141 = sphi 0, %s138
      %s142 = sphi 0, %s141
      %s158 = sphi 0, %s142
    $region4: #{tpu_custom_call.1} parent=1 // loop_header_branch
      %21 = sbr.rel (%p19) target = $region8
    $region5: #{tpu_custom_call.1} parent=1 // loop_body
      %s23 = ssub.s32 %s18, 1
      %s24 = ssub.s32 %s18, 2
      %s25 = sadd.s32 %s18, 1
      %s26 = ssub.s32 %s18, %s25
      %p27 = scmp.eq.s32.totalorder %s26, 0
      %s29 = sadd.s32 %s28, 1
      %s30 = scalar_select %p27, %s28, %s29
      %p33 = pneg %p27
      %p34 = scmp.eq.s32.totalorder %s18, 1
      %p35 = por %p33, %p34
      %p36 = scmp.ne.s32.totalorder %s28, %s31
      %p37 = scmp.eq.s32.totalorder %s18, 0
      %p38 = por %p36, %p37
      %p39 = scmp.ne.s32.totalorder %s28, %s31
      %p40 = scmp.eq.s32.totalorder %s23, 1
      %p41 = por %p39, %p40
      %p42 = scmp.ne.s32.totalorder %s31, %s32
      %p43 = scmp.eq.s32.totalorder %s23, 0
      %p44 = por %p42, %p43
      %p45 = scmp.ne.s32.totalorder %s31, %s32
      %p46 = scmp.eq.s32.totalorder %s24, 1
      %p47 = por %p45, %p46
      %p49 = scmp.ne.s32.totalorder %s32, %s48
      %p50 = scmp.eq.s32.totalorder %s24, 0
      %p51 = por %p49, %p50
      %s53 = sadd.s32 %s52, 1
      %p56 = scmp.eq.s32.totalorder %s18, 1
      %p57 = scmp.ne.s32.totalorder %s52, %s54
      %p58 = scmp.eq.s32.totalorder %s18, 0
      %p59 = por %p57, %p58
      %p60 = scmp.ne.s32.totalorder %s52, %s54
      %p61 = scmp.eq.s32.totalorder %s23, 1
      %p62 = por %p60, %p61
      %p63 = scmp.ne.s32.totalorder %s54, %s55
      %p64 = scmp.eq.s32.totalorder %s23, 0
      %p65 = por %p63, %p64
      %p66 = scmp.ne.s32.totalorder %s54, %s55
      %p67 = scmp.eq.s32.totalorder %s24, 1
      %p68 = por %p66, %p67
      %p70 = scmp.ne.s32.totalorder %s55, %s69
      %p71 = scmp.eq.s32.totalorder %s24, 0
      %p72 = por %p70, %p71
      %s74 = sadd.s32 %s73, 1
      %p77 = scmp.eq.s32.totalorder %s18, 1
      %p78 = scmp.ne.s32.totalorder %s73, %s75
      %p79 = scmp.eq.s32.totalorder %s18, 0
      %p80 = por %p78, %p79
      %p81 = scmp.ne.s32.totalorder %s73, %s75
      %p82 = scmp.eq.s32.totalorder %s23, 1
      %p83 = por %p81, %p82
      %p84 = scmp.ne.s32.totalorder %s75, %s76
      %p85 = scmp.eq.s32.totalorder %s23, 0
      %p86 = por %p84, %p85
      %p87 = scmp.ne.s32.totalorder %s75, %s76
      %p88 = scmp.eq.s32.totalorder %s24, 1
      %p89 = por %p87, %p88
      %p91 = scmp.ne.s32.totalorder %s76, %s90
      %p92 = scmp.eq.s32.totalorder %s24, 0
      %p93 = por %p91, %p92
      %s95 = sadd.s32 %s94, 1
      %p98 = scmp.eq.s32.totalorder %s18, 1
      %p99 = scmp.ne.s32.totalorder %s94, %s96
      %p100 = scmp.eq.s32.totalorder %s18, 0
      %p101 = por %p99, %p100
      %p102 = scmp.ne.s32.totalorder %s94, %s96
      %p103 = scmp.eq.s32.totalorder %s23, 1
      %p104 = por %p102, %p103
      %p105 = scmp.ne.s32.totalorder %s96, %s97
      %p106 = scmp.eq.s32.totalorder %s23, 0
      %p107 = por %p105, %p106
      %p108 = scmp.ne.s32.totalorder %s96, %s97
      %p109 = scmp.eq.s32.totalorder %s24, 1
      %p110 = por %p108, %p109
      %p112 = scmp.ne.s32.totalorder %s97, %s111
      %p113 = scmp.eq.s32.totalorder %s24, 0
      %p114 = por %p112, %p113
      %s116 = sadd.s32 %s115, 1
      %p119 = scmp.eq.s32.totalorder %s18, 1
      %p120 = scmp.ne.s32.totalorder %s115, %s117
      %p121 = scmp.eq.s32.totalorder %s18, 0
      %p122 = por %p120, %p121
      %p123 = scmp.ne.s32.totalorder %s115, %s117
      %p124 = scmp.eq.s32.totalorder %s23, 1
      %p125 = por %p123, %p124
      %p126 = scmp.ne.s32.totalorder %s117, %s118
      %p127 = scmp.eq.s32.totalorder %s23, 0
      %p128 = por %p126, %p127
      %p129 = scmp.ne.s32.totalorder %s117, %s118
      %p130 = scmp.eq.s32.totalorder %s24, 1
      %p131 = por %p129, %p130
      %p133 = scmp.ne.s32.totalorder %s118, %s132
      %p134 = scmp.eq.s32.totalorder %s24, 0
      %p135 = por %p133, %p134
      %s136 = ssub.s32 %s18, %s25
      %p137 = scmp.eq.s32.totalorder %s136, 0
      %s139 = sadd.s32 %s138, 1
      %s140 = scalar_select %p137, %s138, %s139
      %p143 = pneg %p137
      %p144 = scmp.eq.s32.totalorder %s18, 1
      %p145 = por %p143, %p144
      %p146 = scmp.ne.s32.totalorder %s138, %s141
      %p147 = scmp.eq.s32.totalorder %s18, 0
      %p148 = por %p146, %p147
      %p149 = scmp.ne.s32.totalorder %s138, %s141
      %p150 = scmp.eq.s32.totalorder %s23, 1
      %p151 = por %p149, %p150
      %p152 = scmp.ne.s32.totalorder %s141, %s142
      %p153 = scmp.eq.s32.totalorder %s23, 0
      %p154 = por %p152, %p153
      %p155 = scmp.ne.s32.totalorder %s141, %s142
      %p156 = scmp.eq.s32.totalorder %s24, 1
      %p157 = por %p155, %p156
      %p159 = scmp.ne.s32.totalorder %s142, %s158
      %p160 = scmp.eq.s32.totalorder %s24, 0
      %p161 = por %p159, %p160
      %p162 = scmp.le.s32.totalorder 1, %s18
      %p163 = scmp.lt.s32.totalorder %s18, 3
      %p164 = pnand %p162, %p163
      %p165 = pneg %p164
      // Predicated region
      $region9: #{tpu_custom_call.1} parent=5 // pred_check
        _
      $region10: #{tpu_custom_call.1} parent=5 // pred_check_branch
        %167 = sbr.rel (%p164) target = $region12
      $region11: #{tpu_custom_call.1} parent=5 // pred_region
        %s168 = ssub.s32 %s18, 1
        // Predicated region
        $region13: #{tpu_custom_call.1} parent=11 // pred_check
          %p169 = pneg %p65
        $region14: #{tpu_custom_call.1} parent=11 // pred_check_branch
          %171 = sbr.rel (%p169) target = $region16
        $region15: #{tpu_custom_call.1} parent=11 // pred_region
          %s173 = ssub.s32 8192, 8192
          %174 = vsyncadd [#allocation6], %s173
          %s175 = sshll.u32 [#allocation5], 4
          %s176 = int_to_ptr.vmem [resolvable:$true] %s175
          %181 = dma.hbm_to_vmem [thread:$0]  %s1, 8192, %s176, [#allocation6], 256, 256, 16
        $region16: #{tpu_custom_call.1} parent=11 // pred_fallthru
          _
        // Predicated region
        $region17: #{tpu_custom_call.1} parent=11 // pred_check
          %p182 = pneg %p86
        $region18: #{tpu_custom_call.1} parent=11 // pred_check_branch
          %184 = sbr.rel (%p182) target = $region20
        $region19: #{tpu_custom_call.1} parent=11 // pred_region
          _
        $region20: #{tpu_custom_call.1} parent=11 // pred_fallthru
          _
        // Predicated region
        $region21: #{tpu_custom_call.1} parent=11 // pred_check
          %p185 = pneg %p107
        $region22: #{tpu_custom_call.1} parent=11 // pred_check_branch
          %187 = sbr.rel (%p185) target = $region24
        $region23: #{tpu_custom_call.1} parent=11 // pred_region
          %s189 = ssub.s32 8192, 8192
          %190 = vsyncadd [#allocation6], %s189
          %s191 = sshll.u32 [#allocation7], 4
          %s192 = int_to_ptr.vmem [resolvable:$true] %s191
          %197 = dma.hbm_to_vmem [thread:$0]  %s3, 8192, %s192, [#allocation6], 256, 256, 16
        $region24: #{tpu_custom_call.1} parent=11 // pred_fallthru
          _
        // Predicated region
        $region25: #{tpu_custom_call.1} parent=11 // pred_check
          %p198 = pneg %p128
        $region26: #{tpu_custom_call.1} parent=11 // pred_check_branch
          %200 = sbr.rel (%p198) target = $region28
        $region27: #{tpu_custom_call.1} parent=11 // pred_region
          _
        $region28: #{tpu_custom_call.1} parent=11 // pred_fallthru
          _
      $region12: #{tpu_custom_call.1} parent=5 // pred_fallthru
        _
      %p201 = scmp.lt.s32.totalorder %s18, 2
      // Predicated region
      $region29: #{tpu_custom_call.1} parent=5 // pred_check
        %p202 = pneg %p201
      $region30: #{tpu_custom_call.1} parent=5 // pred_check_branch
        %204 = sbr.rel (%p202) target = $region32
      $region31: #{tpu_custom_call.1} parent=5 // pred_region
        // Predicated region
        $region33: #{tpu_custom_call.1} parent=31 // pred_check
          %p205 = pneg %p38
        $region34: #{tpu_custom_call.1} parent=31 // pred_check_branch
          %207 = sbr.rel (%p205) target = $region36
        $region35: #{tpu_custom_call.1} parent=31 // pred_region
          %s208 = sand.u32 %s28, 1
          %s209 = scalar_lea.sflag [#allocation3], %s208
          %s210 = sand.u32 %s28, 1
          %s211 = smul.addr %s210, 512
          %s212 = scalar_lea.vmem [#allocation2], %s211
          %s213 = smul.u32 32, %s18
          %s215 = ssub.s32 8192, 8192
          %216 = vsyncadd %s209, %s215
          %s217 = smul.addr %s213, 2
          %s218 = smul.addr %s217, 128
          %s219 = scalar_lea.hbm %s0, %s218
          %s220 = sshll.u32 %s212, 4
          %s221 = int_to_ptr.vmem [resolvable:$true] %s220
          %226 = dma.hbm_to_vmem [thread:$0]  %s219, 8192, %s221, %s209, 256, 256, 16
        $region36: #{tpu_custom_call.1} parent=31 // pred_fallthru
          _
      $region32: #{tpu_custom_call.1} parent=5 // pred_fallthru
        _
      %p227 = scmp.le.s32.totalorder 1, %s18
      %p228 = scmp.lt.s32.totalorder %s18, 3
      %p229 = pnand %p227, %p228
      %p230 = pneg %p229
      // Predicated region
      $region37: #{tpu_custom_call.1} parent=5 // pred_check
        _
      $region38: #{tpu_custom_call.1} parent=5 // pred_check_branch
        %232 = sbr.rel (%p229) target = $region40
      $region39: #{tpu_custom_call.1} parent=5 // pred_region
        %s233 = ssub.s32 %s18, 1
        %s234 = sand.u32 %s31, 1
        %s235 = scalar_lea.sflag [#allocation3], %s234
        %s236 = sand.u32 %s31, 1
        %s237 = smul.addr %s236, 512
        %s238 = scalar_lea.vmem [#allocation2], %s237
        // Predicated region
        $region41: #{tpu_custom_call.1} parent=39 // pred_check
          %p239 = pneg %p44
        $region42: #{tpu_custom_call.1} parent=39 // pred_check_branch
          %241 = sbr.rel (%p239) target = $region44
        $region43: #{tpu_custom_call.1} parent=39 // pred_region
          %242 = dma.done %s235, 8192
        $region44: #{tpu_custom_call.1} parent=39 // pred_fallthru
          _
        // Predicated region
        $region45: #{tpu_custom_call.1} parent=39 // pred_check
          %p243 = pneg %p65
        $region46: #{tpu_custom_call.1} parent=39 // pred_check_branch
          %245 = sbr.rel (%p243) target = $region48
        $region47: #{tpu_custom_call.1} parent=39 // pred_region
          %246 = dma.done [#allocation6], 8192
        $region48: #{tpu_custom_call.1} parent=39 // pred_fallthru
          _
        // Predicated region
        $region49: #{tpu_custom_call.1} parent=39 // pred_check
          %p247 = pneg %p107
        $region50: #{tpu_custom_call.1} parent=39 // pred_check_branch
          %249 = sbr.rel (%p247) target = $region52
        $region51: #{tpu_custom_call.1} parent=39 // pred_region
          %250 = dma.done [#allocation6], 8192
        $region52: #{tpu_custom_call.1} parent=39 // pred_fallthru
          _
        %s251 = sand.u32 %s31, 1
        %s252 = scalar_lea.sflag [#allocation3], %s251
        %s253 = sand.u32 %s31, 1
        %s254 = smul.addr %s253, 512
        %s255 = scalar_lea.vmem [#allocation2], %s254
        %p256 = pneg %p44
        %p257 = pneg %p41
        %p258 = pneg %p65
        %p259 = pneg %p62
        %p260 = pneg %p86
        %p261 = pneg %p83
        %p262 = pneg %p107
        %p263 = pneg %p104
        %p264 = pneg %p128
        %p265 = pneg %p125
        %p266 = pneg %p154
        %p267 = pneg %p151
        %s268 = sand.u32 %s141, 1
        %s269 = scalar_lea.sflag [#allocation4], %s268
        %s270 = sand.u32 %s141, 1
        %s271 = smul.addr %s270, 512
        %s272 = scalar_lea.vmem [#allocation8], %s271
        %s273 = smul.u32 32, %s23
        %s274 = smul.u32 32, %s23
        %v275 = vld [vmem:[%s238] sm:$0xff]
        %v276 = vld [vmem:[%s238 + $0x8] sm:$0xff]
        %v277 = vld [vmem:[%s238 + $0x10] sm:$0xff]
        %v278 = vld [vmem:[%s238 + $0x18] sm:$0xff]
        %v279 = vld [vmem:[%s238 + $0x20] sm:$0xff]
        %v280 = vld [vmem:[%s238 + $0x28] sm:$0xff]
        %v281 = vld [vmem:[%s238 + $0x30] sm:$0xff]
        %v282 = vld [vmem:[%s238 + $0x38] sm:$0xff]
        %v283 = vld [vmem:[%s238 + $0x40] sm:$0xff]
        %v284 = vld [vmem:[%s238 + $0x48] sm:$0xff]
        %v285 = vld [vmem:[%s238 + $0x50] sm:$0xff]
        %v286 = vld [vmem:[%s238 + $0x58] sm:$0xff]
        %v287 = vld [vmem:[%s238 + $0x60] sm:$0xff]
        %v288 = vld [vmem:[%s238 + $0x68] sm:$0xff]
        %v289 = vld [vmem:[%s238 + $0x70] sm:$0xff]
        %v290 = vld [vmem:[%s238 + $0x78] sm:$0xff]
        %v291 = vld [vmem:[%s238 + $0x80] sm:$0xff]
        %v292 = vld [vmem:[%s238 + $0x88] sm:$0xff]
        %v293 = vld [vmem:[%s238 + $0x90] sm:$0xff]
        %v294 = vld [vmem:[%s238 + $0x98] sm:$0xff]
        %v295 = vld [vmem:[%s238 + $0xa0] sm:$0xff]
        %v296 = vld [vmem:[%s238 + $0xa8] sm:$0xff]
        %v297 = vld [vmem:[%s238 + $0xb0] sm:$0xff]
        %v298 = vld [vmem:[%s238 + $0xb8] sm:$0xff]
        %v299 = vld [vmem:[%s238 + $0xc0] sm:$0xff]
        %v300 = vld [vmem:[%s238 + $0xc8] sm:$0xff]
        %v301 = vld [vmem:[%s238 + $0xd0] sm:$0xff]
        %v302 = vld [vmem:[%s238 + $0xd8] sm:$0xff]
        %v303 = vld [vmem:[%s238 + $0xe0] sm:$0xff]
        %v304 = vld [vmem:[%s238 + $0xe8] sm:$0xff]
        %v305 = vld [vmem:[%s238 + $0xf0] sm:$0xff]
        %v306 = vld [vmem:[%s238 + $0xf8] sm:$0xff]
        %v307 = vld [vmem:[%s238 + $0x100] sm:$0xff]
        %v308 = vld [vmem:[%s238 + $0x108] sm:$0xff]
        %v309 = vld [vmem:[%s238 + $0x110] sm:$0xff]
        %v310 = vld [vmem:[%s238 + $0x118] sm:$0xff]
        %v311 = vld [vmem:[%s238 + $0x120] sm:$0xff]
        %v312 = vld [vmem:[%s238 + $0x128] sm:$0xff]
        %v313 = vld [vmem:[%s238 + $0x130] sm:$0xff]
        %v314 = vld [vmem:[%s238 + $0x138] sm:$0xff]
        %v315 = vld [vmem:[%s238 + $0x140] sm:$0xff]
        %v316 = vld [vmem:[%s238 + $0x148] sm:$0xff]
        %v317 = vld [vmem:[%s238 + $0x150] sm:$0xff]
        %v318 = vld [vmem:[%s238 + $0x158] sm:$0xff]
        %v319 = vld [vmem:[%s238 + $0x160] sm:$0xff]
        %v320 = vld [vmem:[%s238 + $0x168] sm:$0xff]
        %v321 = vld [vmem:[%s238 + $0x170] sm:$0xff]
        %v322 = vld [vmem:[%s238 + $0x178] sm:$0xff]
        %v323 = vld [vmem:[%s238 + $0x180] sm:$0xff]
        %v324 = vld [vmem:[%s238 + $0x188] sm:$0xff]
        %v325 = vld [vmem:[%s238 + $0x190] sm:$0xff]
        %v326 = vld [vmem:[%s238 + $0x198] sm:$0xff]
        %v327 = vld [vmem:[%s238 + $0x1a0] sm:$0xff]
        %v328 = vld [vmem:[%s238 + $0x1a8] sm:$0xff]
        %v329 = vld [vmem:[%s238 + $0x1b0] sm:$0xff]
        %v330 = vld [vmem:[%s238 + $0x1b8] sm:$0xff]
        %v331 = vld [vmem:[%s238 + $0x1c0] sm:$0xff]
        %v332 = vld [vmem:[%s238 + $0x1c8] sm:$0xff]
        %v333 = vld [vmem:[%s238 + $0x1d0] sm:$0xff]
        %v334 = vld [vmem:[%s238 + $0x1d8] sm:$0xff]
        %v335 = vld [vmem:[%s238 + $0x1e0] sm:$0xff]
        %v336 = vld [vmem:[%s238 + $0x1e8] sm:$0xff]
        %v337 = vld [vmem:[%s238 + $0x1f0] sm:$0xff]
        %v338 = vld [vmem:[%s238 + $0x1f8] sm:$0xff]
        %v339 = vld [vmem:[#allocation5] sm:$0xff]
        %v340 = vld [vmem:[#allocation5 + $0x8] sm:$0xff]
        %v341 = vld [vmem:[#allocation5 + $0x10] sm:$0xff]
        %v342 = vld [vmem:[#allocation5 + $0x18] sm:$0xff]
        %v343 = vld [vmem:[#allocation5 + $0x20] sm:$0xff]
        %v344 = vld [vmem:[#allocation5 + $0x28] sm:$0xff]
        %v345 = vld [vmem:[#allocation5 + $0x30] sm:$0xff]
        %v346 = vld [vmem:[#allocation5 + $0x38] sm:$0xff]
        %v347 = vld [vmem:[#allocation5 + $0x40] sm:$0xff]
        %v348 = vld [vmem:[#allocation5 + $0x48] sm:$0xff]
        %v349 = vld [vmem:[#allocation5 + $0x50] sm:$0xff]
        %v350 = vld [vmem:[#allocation5 + $0x58] sm:$0xff]
        %v351 = vld [vmem:[#allocation5 + $0x60] sm:$0xff]
        %v352 = vld [vmem:[#allocation5 + $0x68] sm:$0xff]
        %v353 = vld [vmem:[#allocation5 + $0x70] sm:$0xff]
        %v354 = vld [vmem:[#allocation5 + $0x78] sm:$0xff]
        %v355 = vld [vmem:[#allocation5 + $0x80] sm:$0xff]
        %v356 = vld [vmem:[#allocation5 + $0x88] sm:$0xff]
        %v357 = vld [vmem:[#allocation5 + $0x90] sm:$0xff]
        %v358 = vld [vmem:[#allocation5 + $0x98] sm:$0xff]
        %v359 = vld [vmem:[#allocation5 + $0xa0] sm:$0xff]
        %v360 = vld [vmem:[#allocation5 + $0xa8] sm:$0xff]
        %v361 = vld [vmem:[#allocation5 + $0xb0] sm:$0xff]
        %v362 = vld [vmem:[#allocation5 + $0xb8] sm:$0xff]
        %v363 = vld [vmem:[#allocation5 + $0xc0] sm:$0xff]
        %v364 = vld [vmem:[#allocation5 + $0xc8] sm:$0xff]
        %v365 = vld [vmem:[#allocation5 + $0xd0] sm:$0xff]
        %v366 = vld [vmem:[#allocation5 + $0xd8] sm:$0xff]
        %v367 = vld [vmem:[#allocation5 + $0xe0] sm:$0xff]
        %v368 = vld [vmem:[#allocation5 + $0xe8] sm:$0xff]
        %v369 = vld [vmem:[#allocation5 + $0xf0] sm:$0xff]
        %v370 = vld [vmem:[#allocation5 + $0xf8] sm:$0xff]
        %v371 = vld [vmem:[#allocation5 + $0x100] sm:$0xff]
        %v372 = vld [vmem:[#allocation5 + $0x108] sm:$0xff]
        %v373 = vld [vmem:[#allocation5 + $0x110] sm:$0xff]
        %v374 = vld [vmem:[#allocation5 + $0x118] sm:$0xff]
        %v375 = vld [vmem:[#allocation5 + $0x120] sm:$0xff]
        %v376 = vld [vmem:[#allocation5 + $0x128] sm:$0xff]
        %v377 = vld [vmem:[#allocation5 + $0x130] sm:$0xff]
        %v378 = vld [vmem:[#allocation5 + $0x138] sm:$0xff]
        %v379 = vld [vmem:[#allocation5 + $0x140] sm:$0xff]
        %v380 = vld [vmem:[#allocation5 + $0x148] sm:$0xff]
        %v381 = vld [vmem:[#allocation5 + $0x150] sm:$0xff]
        %v382 = vld [vmem:[#allocation5 + $0x158] sm:$0xff]
        %v383 = vld [vmem:[#allocation5 + $0x160] sm:$0xff]
        %v384 = vld [vmem:[#allocation5 + $0x168] sm:$0xff]
        %v385 = vld [vmem:[#allocation5 + $0x170] sm:$0xff]
        %v386 = vld [vmem:[#allocation5 + $0x178] sm:$0xff]
        %v387 = vld [vmem:[#allocation5 + $0x180] sm:$0xff]
        %v388 = vld [vmem:[#allocation5 + $0x188] sm:$0xff]
        %v389 = vld [vmem:[#allocation5 + $0x190] sm:$0xff]
        %v390 = vld [vmem:[#allocation5 + $0x198] sm:$0xff]
        %v391 = vld [vmem:[#allocation5 + $0x1a0] sm:$0xff]
        %v392 = vld [vmem:[#allocation5 + $0x1a8] sm:$0xff]
        %v393 = vld [vmem:[#allocation5 + $0x1b0] sm:$0xff]
        %v394 = vld [vmem:[#allocation5 + $0x1b8] sm:$0xff]
        %v395 = vld [vmem:[#allocation5 + $0x1c0] sm:$0xff]
        %v396 = vld [vmem:[#allocation5 + $0x1c8] sm:$0xff]
        %v397 = vld [vmem:[#allocation5 + $0x1d0] sm:$0xff]
        %v398 = vld [vmem:[#allocation5 + $0x1d8] sm:$0xff]
        %v399 = vld [vmem:[#allocation5 + $0x1e0] sm:$0xff]
        %v400 = vld [vmem:[#allocation5 + $0x1e8] sm:$0xff]
        %v401 = vld [vmem:[#allocation5 + $0x1f0] sm:$0xff]
        %v402 = vld [vmem:[#allocation5 + $0x1f8] sm:$0xff]
        %v403 = vld [vmem:[%s2] sm:$0x3]
        %v405 = vlaneseq
        %v406 = vshrl.u32 %v405, 7
        %v407 = vsub.s32 0, %v406
        %v408 = vrot.slane %v403, %v407
        %v409 = vlaneseq
        %v410 = vshrl.u32 %v409, 7
        %v411 = vsub.s32 1, %v410
        %v412 = vrot.slane %v403, %v411
        %415 = vmatprep.subr.mxu0 %v340
        %416 = vmatpush1.msra.mxu0 %v339
        %417 = vmatprep.subr.mxu0 %v342
        %418 = vmatpush1.msra.mxu0 %v341
        %419 = vmatprep.subr.mxu0 %v344
        %420 = vmatpush1.msra.mxu0 %v343
        %421 = vmatprep.subr.mxu0 %v346
        %422 = vmatpush1.msra.mxu0 %v345
        %423 = vmatprep.subr.mxu0 %v348
        %424 = vmatpush1.msra.mxu0 %v347
        %425 = vmatprep.subr.mxu0 %v350
        %426 = vmatpush1.msra.mxu0 %v349
        %427 = vmatprep.subr.mxu0 %v352
        %428 = vmatpush1.msra.mxu0 %v351
        %429 = vmatprep.subr.mxu0 %v354
        %430 = vmatpush1.msra.mxu0 %v353
        %431 = vmatprep.subr.mxu0 %v356
        %432 = vmatpush1.msra.mxu0 %v355
        %433 = vmatprep.subr.mxu0 %v358
        %434 = vmatpush1.msra.mxu0 %v357
        %435 = vmatprep.subr.mxu0 %v360
        %436 = vmatpush1.msra.mxu0 %v359
        %437 = vmatprep.subr.mxu0 %v362
        %438 = vmatpush1.msra.mxu0 %v361
        %439 = vmatprep.subr.mxu0 %v364
        %440 = vmatpush1.msra.mxu0 %v363
        %441 = vmatprep.subr.mxu0 %v366
        %442 = vmatpush1.msra.mxu0 %v365
        %443 = vmatprep.subr.mxu0 %v368
        %444 = vmatpush1.msra.mxu0 %v367
        %445 = vmatprep.subr.mxu0 %v370
        %446 = vmatpush1.msra.mxu0 %v369
        %447 = vmatprep.subr.mxu0 %v372
        %448 = vmatpush1.msra.mxu0 %v371
        %449 = vmatprep.subr.mxu0 %v374
        %450 = vmatpush1.msra.mxu0 %v373
        %451 = vmatprep.subr.mxu0 %v376
        %452 = vmatpush1.msra.mxu0 %v375
        %453 = vmatprep.subr.mxu0 %v378
        %454 = vmatpush1.msra.mxu0 %v377
        %455 = vmatprep.subr.mxu0 %v380
        %456 = vmatpush1.msra.mxu0 %v379
        %457 = vmatprep.subr.mxu0 %v382
        %458 = vmatpush1.msra.mxu0 %v381
        %459 = vmatprep.subr.mxu0 %v384
        %460 = vmatpush1.msra.mxu0 %v383
        %461 = vmatprep.subr.mxu0 %v386
        %462 = vmatpush1.msra.mxu0 %v385
        %463 = vmatprep.subr.mxu0 %v388
        %464 = vmatpush1.msra.mxu0 %v387
        %465 = vmatprep.subr.mxu0 %v390
        %466 = vmatpush1.msra.mxu0 %v389
        %467 = vmatprep.subr.mxu0 %v392
        %468 = vmatpush1.msra.mxu0 %v391
        %469 = vmatprep.subr.mxu0 %v394
        %470 = vmatpush1.msra.mxu0 %v393
        %471 = vmatprep.subr.mxu0 %v396
        %472 = vmatpush1.msra.mxu0 %v395
        %473 = vmatprep.subr.mxu0 %v398
        %474 = vmatpush1.msra.mxu0 %v397
        %475 = vmatprep.subr.mxu0 %v400
        %476 = vmatpush1.msra.mxu0 %v399
        %477 = vmatprep.subr.mxu0 %v402
        %478 = vmatpush1.msra.mxu0 %v401
        %479 = vmatprep.mubr.f32.mxu0 %v276
        %480 = vmatmul.mubr.f32.gmra.mrb[0].mxu0 %v275
        %v481 = vpop.f32.mrb[0].mxu0
        %v482 = vadd.f32 %v408, %v481
        %v483 = vpop.f32.mrb[0].mxu0
        %v484 = vadd.f32 %v412, %v483
        %485 = vmatprep.mubr.f32.mxu0 %v278
        %486 = vmatmul.mubr.f32.gmra.mrb[0].mxu0 %v277
        %v487 = vpop.f32.mrb[0].mxu0
        %v488 = vadd.f32 %v408, %v487
        %v489 = vpop.f32.mrb[0].mxu0
        %v490 = vadd.f32 %v412, %v489
        %491 = vmatprep.mubr.f32.mxu0 %v280
        %492 = vmatmul.mubr.f32.gmra.mrb[0].mxu0 %v279
        %v493 = vpop.f32.mrb[0].mxu0
        %v494 = vadd.f32 %v408, %v493
        %v495 = vpop.f32.mrb[0].mxu0
        %v496 = vadd.f32 %v412, %v495
        %497 = vmatprep.mubr.f32.mxu0 %v282
        %498 = vmatmul.mubr.f32.gmra.mrb[0].mxu0 %v281
        %v499 = vpop.f32.mrb[0].mxu0
        %v500 = vadd.f32 %v408, %v499
        %v501 = vpop.f32.mrb[0].mxu0
        %v502 = vadd.f32 %v412, %v501
        %503 = vmatprep.mubr.f32.mxu0 %v284
        %504 = vmatmul.mubr.f32.gmra.mrb[0].mxu0 %v283
        %v505 = vpop.f32.mrb[0].mxu0
        %v506 = vadd.f32 %v408, %v505
        %v507 = vpop.f32.mrb[0].mxu0
        %v508 = vadd.f32 %v412, %v507
        %509 = vmatprep.mubr.f32.mxu0 %v286
        %510 = vmatmul.mubr.f32.gmra.mrb[0].mxu0 %v285
        %v511 = vpop.f32.mrb[0].mxu0
        %v512 = vadd.f32 %v408, %v511
        %v513 = vpop.f32.mrb[0].mxu0
        %v514 = vadd.f32 %v412, %v513
        %515 = vmatprep.mubr.f32.mxu0 %v288
        %516 = vmatmul.mubr.f32.gmra.mrb[0].mxu0 %v287
        %v517 = vpop.f32.mrb[0].mxu0
        %v518 = vadd.f32 %v408, %v517
        %v519 = vpop.f32.mrb[0].mxu0
        %v520 = vadd.f32 %v412, %v519
        %521 = vmatprep.mubr.f32.mxu0 %v290
        %522 = vmatmul.mubr.f32.gmra.mrb[0].mxu0 %v289
        %v523 = vpop.f32.mrb[0].mxu0
        %v524 = vadd.f32 %v408, %v523
        %v525 = vpop.f32.mrb[0].mxu0
        %v526 = vadd.f32 %v412, %v525
        %527 = vmatprep.mubr.f32.mxu0 %v292
        %528 = vmatmul.mubr.f32.gmra.mrb[0].mxu0 %v291
        %v529 = vpop.f32.mrb[0].mxu0
        %v530 = vadd.f32 %v408, %v529
        %v531 = vpop.f32.mrb[0].mxu0
        %v532 = vadd.f32 %v412, %v531
        %533 = vmatprep.mubr.f32.mxu0 %v294
        %534 = vmatmul.mubr.f32.gmra.mrb[0].mxu0 %v293
        %v535 = vpop.f32.mrb[0].mxu0
        %v536 = vadd.f32 %v408, %v535
        %v537 = vpop.f32.mrb[0].mxu0
        %v538 = vadd.f32 %v412, %v537
        %539 = vmatprep.mubr.f32.mxu0 %v296
        %540 = vmatmul.mubr.f32.gmra.mrb[0].mxu0 %v295
        %v541 = vpop.f32.mrb[0].mxu0
        %v542 = vadd.f32 %v408, %v541
        %v543 = vpop.f32.mrb[0].mxu0
        %v544 = vadd.f32 %v412, %v543
        %545 = vmatprep.mubr.f32.mxu0 %v298
        %546 = vmatmul.mubr.f32.gmra.mrb[0].mxu0 %v297
        %v547 = vpop.f32.mrb[0].mxu0
        %v548 = vadd.f32 %v408, %v547
        %v549 = vpop.f32.mrb[0].mxu0
        %v550 = vadd.f32 %v412, %v549
        %551 = vmatprep.mubr.f32.mxu0 %v300
        %552 = vmatmul.mubr.f32.gmra.mrb[0].mxu0 %v299
        %v553 = vpop.f32.mrb[0].mxu0
        %v554 = vadd.f32 %v408, %v553
        %v555 = vpop.f32.mrb[0].mxu0
        %v556 = vadd.f32 %v412, %v555
        %557 = vmatprep.mubr.f32.mxu0 %v302
        %558 = vmatmul.mubr.f32.gmra.mrb[0].mxu0 %v301
        %v559 = vpop.f32.mrb[0].mxu0
        %v560 = vadd.f32 %v408, %v559
        %v561 = vpop.f32.mrb[0].mxu0
        %v562 = vadd.f32 %v412, %v561
        %563 = vmatprep.mubr.f32.mxu0 %v304
        %564 = vmatmul.mubr.f32.gmra.mrb[0].mxu0 %v303
        %v565 = vpop.f32.mrb[0].mxu0
        %v566 = vadd.f32 %v408, %v565
        %v567 = vpop.f32.mrb[0].mxu0
        %v568 = vadd.f32 %v412, %v567
        %569 = vmatprep.mubr.f32.mxu0 %v306
        %570 = vmatmul.mubr.f32.gmra.mrb[0].mxu0 %v305
        %v571 = vpop.f32.mrb[0].mxu0
        %v572 = vadd.f32 %v408, %v571
        %v573 = vpop.f32.mrb[0].mxu0
        %v574 = vadd.f32 %v412, %v573
        %575 = vmatprep.mubr.f32.mxu0 %v308
        %576 = vmatmul.mubr.f32.gmra.mrb[0].mxu0 %v307
        %v577 = vpop.f32.mrb[0].mxu0
        %v578 = vadd.f32 %v408, %v577
        %v579 = vpop.f32.mrb[0].mxu0
        %v580 = vadd.f32 %v412, %v579
        %581 = vmatprep.mubr.f32.mxu0 %v310
        %582 = vmatmul.mubr.f32.gmra.mrb[0].mxu0 %v309
        %v583 = vpop.f32.mrb[0].mxu0
        %v584 = vadd.f32 %v408, %v583
        %v585 = vpop.f32.mrb[0].mxu0
        %v586 = vadd.f32 %v412, %v585
        %587 = vmatprep.mubr.f32.mxu0 %v312
        %588 = vmatmul.mubr.f32.gmra.mrb[0].mxu0 %v311
        %v589 = vpop.f32.mrb[0].mxu0
        %v590 = vadd.f32 %v408, %v589
        %v591 = vpop.f32.mrb[0].mxu0
        %v592 = vadd.f32 %v412, %v591
        %593 = vmatprep.mubr.f32.mxu0 %v314
        %594 = vmatmul.mubr.f32.gmra.mrb[0].mxu0 %v313
        %v595 = vpop.f32.mrb[0].mxu0
        %v596 = vadd.f32 %v408, %v595
        %v597 = vpop.f32.mrb[0].mxu0
        %v598 = vadd.f32 %v412, %v597
        %599 = vmatprep.mubr.f32.mxu0 %v316
        %600 = vmatmul.mubr.f32.gmra.mrb[0].mxu0 %v315
        %v601 = vpop.f32.mrb[0].mxu0
        %v602 = vadd.f32 %v408, %v601
        %v603 = vpop.f32.mrb[0].mxu0
        %v604 = vadd.f32 %v412, %v603
        %605 = vmatprep.mubr.f32.mxu0 %v318
        %606 = vmatmul.mubr.f32.gmra.mrb[0].mxu0 %v317
        %v607 = vpop.f32.mrb[0].mxu0
        %v608 = vadd.f32 %v408, %v607
        %v609 = vpop.f32.mrb[0].mxu0
        %v610 = vadd.f32 %v412, %v609
        %611 = vmatprep.mubr.f32.mxu0 %v320
        %612 = vmatmul.mubr.f32.gmra.mrb[0].mxu0 %v319
        %v613 = vpop.f32.mrb[0].mxu0
        %v614 = vadd.f32 %v408, %v613
        %v615 = vpop.f32.mrb[0].mxu0
        %v616 = vadd.f32 %v412, %v615
        %617 = vmatprep.mubr.f32.mxu0 %v322
        %618 = vmatmul.mubr.f32.gmra.mrb[0].mxu0 %v321
        %v619 = vpop.f32.mrb[0].mxu0
        %v620 = vadd.f32 %v408, %v619
        %v621 = vpop.f32.mrb[0].mxu0
        %v622 = vadd.f32 %v412, %v621
        %623 = vmatprep.mubr.f32.mxu0 %v324
        %624 = vmatmul.mubr.f32.gmra.mrb[0].mxu0 %v323
        %v625 = vpop.f32.mrb[0].mxu0
        %v626 = vadd.f32 %v408, %v625
        %v627 = vpop.f32.mrb[0].mxu0
        %v628 = vadd.f32 %v412, %v627
        %629 = vmatprep.mubr.f32.mxu0 %v326
        %630 = vmatmul.mubr.f32.gmra.mrb[0].mxu0 %v325
        %v631 = vpop.f32.mrb[0].mxu0
        %v632 = vadd.f32 %v408, %v631
        %v633 = vpop.f32.mrb[0].mxu0
        %v634 = vadd.f32 %v412, %v633
        %635 = vmatprep.mubr.f32.mxu0 %v328
        %636 = vmatmul.mubr.f32.gmra.mrb[0].mxu0 %v327
        %v637 = vpop.f32.mrb[0].mxu0
        %v638 = vadd.f32 %v408, %v637
        %v639 = vpop.f32.mrb[0].mxu0
        %v640 = vadd.f32 %v412, %v639
        %641 = vmatprep.mubr.f32.mxu0 %v330
        %642 = vmatmul.mubr.f32.gmra.mrb[0].mxu0 %v329
        %v643 = vpop.f32.mrb[0].mxu0
        %v644 = vadd.f32 %v408, %v643
        %v645 = vpop.f32.mrb[0].mxu0
        %v646 = vadd.f32 %v412, %v645
        %647 = vmatprep.mubr.f32.mxu0 %v332
        %648 = vmatmul.mubr.f32.gmra.mrb[0].mxu0 %v331
        %v649 = vpop.f32.mrb[0].mxu0
        %v650 = vadd.f32 %v408, %v649
        %v651 = vpop.f32.mrb[0].mxu0
        %v652 = vadd.f32 %v412, %v651
        %653 = vmatprep.mubr.f32.mxu0 %v334
        %654 = vmatmul.mubr.f32.gmra.mrb[0].mxu0 %v333
        %v655 = vpop.f32.mrb[0].mxu0
        %v656 = vadd.f32 %v408, %v655
        %v657 = vpop.f32.mrb[0].mxu0
        %v658 = vadd.f32 %v412, %v657
        %659 = vmatprep.mubr.f32.mxu0 %v336
        %660 = vmatmul.mubr.f32.gmra.mrb[0].mxu0 %v335
        %v661 = vpop.f32.mrb[0].mxu0
        %v662 = vadd.f32 %v408, %v661
        %v663 = vpop.f32.mrb[0].mxu0
        %v664 = vadd.f32 %v412, %v663
        %665 = vmatprep.mubr.f32.mxu0 %v338
        %666 = vmatmul.mubr.f32.gmra.mrb[0].mxu0 %v337
        %v667 = vpop.f32.mrb[0].mxu0
        %v668 = vadd.f32 %v408, %v667
        %v669 = vpop.f32.mrb[0].mxu0
        %v670 = vadd.f32 %v412, %v669
        %671 = vdwg.mxu0
        %v672 = vmax.f32 %v482, 0.0
        %v673 = vmax.f32 %v484, 0.0
        %v674 = vmax.f32 %v488, 0.0
        %v675 = vmax.f32 %v490, 0.0
        %v676 = vmax.f32 %v494, 0.0
        %v677 = vmax.f32 %v496, 0.0
        %v678 = vmax.f32 %v500, 0.0
        %v679 = vmax.f32 %v502, 0.0
        %v680 = vmax.f32 %v506, 0.0
        %v681 = vmax.f32 %v508, 0.0
        %v682 = vmax.f32 %v512, 0.0
        %v683 = vmax.f32 %v514, 0.0
        %v684 = vmax.f32 %v518, 0.0
        %v685 = vmax.f32 %v520, 0.0
        %v686 = vmax.f32 %v524, 0.0
        %v687 = vmax.f32 %v526, 0.0
        %v688 = vmax.f32 %v530, 0.0
        %v689 = vmax.f32 %v532, 0.0
        %v690 = vmax.f32 %v536, 0.0
        %v691 = vmax.f32 %v538, 0.0
        %v692 = vmax.f32 %v542, 0.0
        %v693 = vmax.f32 %v544, 0.0
        %v694 = vmax.f32 %v548, 0.0
        %v695 = vmax.f32 %v550, 0.0
        %v696 = vmax.f32 %v554, 0.0
        %v697 = vmax.f32 %v556, 0.0
        %v698 = vmax.f32 %v560, 0.0
        %v699 = vmax.f32 %v562, 0.0
        %v700 = vmax.f32 %v566, 0.0
        %v701 = vmax.f32 %v568, 0.0
        %v702 = vmax.f32 %v572, 0.0
        %v703 = vmax.f32 %v574, 0.0
        %v704 = vmax.f32 %v578, 0.0
        %v705 = vmax.f32 %v580, 0.0
        %v706 = vmax.f32 %v584, 0.0
        %v707 = vmax.f32 %v586, 0.0
        %v708 = vmax.f32 %v590, 0.0
        %v709 = vmax.f32 %v592, 0.0
        %v710 = vmax.f32 %v596, 0.0
        %v711 = vmax.f32 %v598, 0.0
        %v712 = vmax.f32 %v602, 0.0
        %v713 = vmax.f32 %v604, 0.0
        %v714 = vmax.f32 %v608, 0.0
        %v715 = vmax.f32 %v610, 0.0
        %v716 = vmax.f32 %v614, 0.0
        %v717 = vmax.f32 %v616, 0.0
        %v718 = vmax.f32 %v620, 0.0
        %v719 = vmax.f32 %v622, 0.0
        %v720 = vmax.f32 %v626, 0.0
        %v721 = vmax.f32 %v628, 0.0
        %v722 = vmax.f32 %v632, 0.0
        %v723 = vmax.f32 %v634, 0.0
        %v724 = vmax.f32 %v638, 0.0
        %v725 = vmax.f32 %v640, 0.0
        %v726 = vmax.f32 %v644, 0.0
        %v727 = vmax.f32 %v646, 0.0
        %v728 = vmax.f32 %v650, 0.0
        %v729 = vmax.f32 %v652, 0.0
        %v730 = vmax.f32 %v656, 0.0
        %v731 = vmax.f32 %v658, 0.0
        %v732 = vmax.f32 %v662, 0.0
        %v733 = vmax.f32 %v664, 0.0
        %v734 = vmax.f32 %v668, 0.0
        %v735 = vmax.f32 %v670, 0.0
        %v736 = vld [vmem:[#allocation7] sm:$0xff]
        %v737 = vld [vmem:[#allocation7 + $0x8] sm:$0xff]
        %v738 = vld [vmem:[#allocation7 + $0x10] sm:$0xff]
        %v739 = vld [vmem:[#allocation7 + $0x18] sm:$0xff]
        %v740 = vld [vmem:[#allocation7 + $0x20] sm:$0xff]
        %v741 = vld [vmem:[#allocation7 + $0x28] sm:$0xff]
        %v742 = vld [vmem:[#allocation7 + $0x30] sm:$0xff]
        %v743 = vld [vmem:[#allocation7 + $0x38] sm:$0xff]
        %v744 = vld [vmem:[#allocation7 + $0x40] sm:$0xff]
        %v745 = vld [vmem:[#allocation7 + $0x48] sm:$0xff]
        %v746 = vld [vmem:[#allocation7 + $0x50] sm:$0xff]
        %v747 = vld [vmem:[#allocation7 + $0x58] sm:$0xff]
        %v748 = vld [vmem:[#allocation7 + $0x60] sm:$0xff]
        %v749 = vld [vmem:[#allocation7 + $0x68] sm:$0xff]
        %v750 = vld [vmem:[#allocation7 + $0x70] sm:$0xff]
        %v751 = vld [vmem:[#allocation7 + $0x78] sm:$0xff]
        %v752 = vld [vmem:[#allocation7 + $0x80] sm:$0xff]
        %v753 = vld [vmem:[#allocation7 + $0x88] sm:$0xff]
        %v754 = vld [vmem:[#allocation7 + $0x90] sm:$0xff]
        %v755 = vld [vmem:[#allocation7 + $0x98] sm:$0xff]
        %v756 = vld [vmem:[#allocation7 + $0xa0] sm:$0xff]
        %v757 = vld [vmem:[#allocation7 + $0xa8] sm:$0xff]
        %v758 = vld [vmem:[#allocation7 + $0xb0] sm:$0xff]
        %v759 = vld [vmem:[#allocation7 + $0xb8] sm:$0xff]
        %v760 = vld [vmem:[#allocation7 + $0xc0] sm:$0xff]
        %v761 = vld [vmem:[#allocation7 + $0xc8] sm:$0xff]
        %v762 = vld [vmem:[#allocation7 + $0xd0] sm:$0xff]
        %v763 = vld [vmem:[#allocation7 + $0xd8] sm:$0xff]
        %v764 = vld [vmem:[#allocation7 + $0xe0] sm:$0xff]
        %v765 = vld [vmem:[#allocation7 + $0xe8] sm:$0xff]
        %v766 = vld [vmem:[#allocation7 + $0xf0] sm:$0xff]
        %v767 = vld [vmem:[#allocation7 + $0xf8] sm:$0xff]
        %v768 = vld [vmem:[#allocation7 + $0x100] sm:$0xff]
        %v769 = vld [vmem:[#allocation7 + $0x108] sm:$0xff]
        %v770 = vld [vmem:[#allocation7 + $0x110] sm:$0xff]
        %v771 = vld [vmem:[#allocation7 + $0x118] sm:$0xff]
        %v772 = vld [vmem:[#allocation7 + $0x120] sm:$0xff]
        %v773 = vld [vmem:[#allocation7 + $0x128] sm:$0xff]
        %v774 = vld [vmem:[#allocation7 + $0x130] sm:$0xff]
        %v775 = vld [vmem:[#allocation7 + $0x138] sm:$0xff]
        %v776 = vld [vmem:[#allocation7 + $0x140] sm:$0xff]
        %v777 = vld [vmem:[#allocation7 + $0x148] sm:$0xff]
        %v778 = vld [vmem:[#allocation7 + $0x150] sm:$0xff]
        %v779 = vld [vmem:[#allocation7 + $0x158] sm:$0xff]
        %v780 = vld [vmem:[#allocation7 + $0x160] sm:$0xff]
        %v781 = vld [vmem:[#allocation7 + $0x168] sm:$0xff]
        %v782 = vld [vmem:[#allocation7 + $0x170] sm:$0xff]
        %v783 = vld [vmem:[#allocation7 + $0x178] sm:$0xff]
        %v784 = vld [vmem:[#allocation7 + $0x180] sm:$0xff]
        %v785 = vld [vmem:[#allocation7 + $0x188] sm:$0xff]
        %v786 = vld [vmem:[#allocation7 + $0x190] sm:$0xff]
        %v787 = vld [vmem:[#allocation7 + $0x198] sm:$0xff]
        %v788 = vld [vmem:[#allocation7 + $0x1a0] sm:$0xff]
        %v789 = vld [vmem:[#allocation7 + $0x1a8] sm:$0xff]
        %v790 = vld [vmem:[#allocation7 + $0x1b0] sm:$0xff]
        %v791 = vld [vmem:[#allocation7 + $0x1b8] sm:$0xff]
        %v792 = vld [vmem:[#allocation7 + $0x1c0] sm:$0xff]
        %v793 = vld [vmem:[#allocation7 + $0x1c8] sm:$0xff]
        %v794 = vld [vmem:[#allocation7 + $0x1d0] sm:$0xff]
        %v795 = vld [vmem:[#allocation7 + $0x1d8] sm:$0xff]
        %v796 = vld [vmem:[#allocation7 + $0x1e0] sm:$0xff]
        %v797 = vld [vmem:[#allocation7 + $0x1e8] sm:$0xff]
        %v798 = vld [vmem:[#allocation7 + $0x1f0] sm:$0xff]
        %v799 = vld [vmem:[#allocation7 + $0x1f8] sm:$0xff]
        %v800 = vld [vmem:[%s4] sm:$0x3]
        %v802 = vlaneseq
        %v803 = vshrl.u32 %v802, 7
        %v804 = vsub.s32 0, %v803
        %v805 = vrot.slane %v800, %v804
        %v806 = vlaneseq
        %v807 = vshrl.u32 %v806, 7
        %v808 = vsub.s32 1, %v807
        %v809 = vrot.slane %v800, %v808
        %812 = vmatprep.subr.mxu0 %v737
        %813 = vmatpush1.msra.mxu0 %v736
        %814 = vmatprep.subr.mxu0 %v739
        %815 = vmatpush1.msra.mxu0 %v738
        %816 = vmatprep.subr.mxu0 %v741
        %817 = vmatpush1.msra.mxu0 %v740
        %818 = vmatprep.subr.mxu0 %v743
        %819 = vmatpush1.msra.mxu0 %v742
        %820 = vmatprep.subr.mxu0 %v745
        %821 = vmatpush1.msra.mxu0 %v744
        %822 = vmatprep.subr.mxu0 %v747
        %823 = vmatpush1.msra.mxu0 %v746
        %824 = vmatprep.subr.mxu0 %v749
        %825 = vmatpush1.msra.mxu0 %v748
        %826 = vmatprep.subr.mxu0 %v751
        %827 = vmatpush1.msra.mxu0 %v750
        %828 = vmatprep.subr.mxu0 %v753
        %829 = vmatpush1.msra.mxu0 %v752
        %830 = vmatprep.subr.mxu0 %v755
        %831 = vmatpush1.msra.mxu0 %v754
        %832 = vmatprep.subr.mxu0 %v757
        %833 = vmatpush1.msra.mxu0 %v756
        %834 = vmatprep.subr.mxu0 %v759
        %835 = vmatpush1.msra.mxu0 %v758
        %836 = vmatprep.subr.mxu0 %v761
        %837 = vmatpush1.msra.mxu0 %v760
        %838 = vmatprep.subr.mxu0 %v763
        %839 = vmatpush1.msra.mxu0 %v762
        %840 = vmatprep.subr.mxu0 %v765
        %841 = vmatpush1.msra.mxu0 %v764
        %842 = vmatprep.subr.mxu0 %v767
        %843 = vmatpush1.msra.mxu0 %v766
        %844 = vmatprep.subr.mxu0 %v769
        %845 = vmatpush1.msra.mxu0 %v768
        %846 = vmatprep.subr.mxu0 %v771
        %847 = vmatpush1.msra.mxu0 %v770
        %848 = vmatprep.subr.mxu0 %v773
        %849 = vmatpush1.msra.mxu0 %v772
        %850 = vmatprep.subr.mxu0 %v775
        %851 = vmatpush1.msra.mxu0 %v774
        %852 = vmatprep.subr.mxu0 %v777
        %853 = vmatpush1.msra.mxu0 %v776
        %854 = vmatprep.subr.mxu0 %v779
        %855 = vmatpush1.msra.mxu0 %v778
        %856 = vmatprep.subr.mxu0 %v781
        %857 = vmatpush1.msra.mxu0 %v780
        %858 = vmatprep.subr.mxu0 %v783
        %859 = vmatpush1.msra.mxu0 %v782
        %860 = vmatprep.subr.mxu0 %v785
        %861 = vmatpush1.msra.mxu0 %v784
        %862 = vmatprep.subr.mxu0 %v787
        %863 = vmatpush1.msra.mxu0 %v786
        %864 = vmatprep.subr.mxu0 %v789
        %865 = vmatpush1.msra.mxu0 %v788
        %866 = vmatprep.subr.mxu0 %v791
        %867 = vmatpush1.msra.mxu0 %v790
        %868 = vmatprep.subr.mxu0 %v793
        %869 = vmatpush1.msra.mxu0 %v792
        %870 = vmatprep.subr.mxu0 %v795
        %871 = vmatpush1.msra.mxu0 %v794
        %872 = vmatprep.subr.mxu0 %v797
        %873 = vmatpush1.msra.mxu0 %v796
        %874 = vmatprep.subr.mxu0 %v799
        %875 = vmatpush1.msra.mxu0 %v798
        %876 = vmatprep.mubr.f32.mxu0 %v673
        %877 = vmatmul.mubr.f32.gmra.mrb[0].mxu0 %v672
        %v878 = vpop.f32.mrb[0].mxu0
        %v879 = vadd.f32 %v805, %v878
        %v880 = vpop.f32.mrb[0].mxu0
        %v881 = vadd.f32 %v809, %v880
        %882 = vmatprep.mubr.f32.mxu0 %v675
        %883 = vmatmul.mubr.f32.gmra.mrb[0].mxu0 %v674
        %v884 = vpop.f32.mrb[0].mxu0
        %v885 = vadd.f32 %v805, %v884
        %v886 = vpop.f32.mrb[0].mxu0
        %v887 = vadd.f32 %v809, %v886
        %888 = vmatprep.mubr.f32.mxu0 %v677
        %889 = vmatmul.mubr.f32.gmra.mrb[0].mxu0 %v676
        %v890 = vpop.f32.mrb[0].mxu0
        %v891 = vadd.f32 %v805, %v890
        %v892 = vpop.f32.mrb[0].mxu0
        %v893 = vadd.f32 %v809, %v892
        %894 = vmatprep.mubr.f32.mxu0 %v679
        %895 = vmatmul.mubr.f32.gmra.mrb[0].mxu0 %v678
        %v896 = vpop.f32.mrb[0].mxu0
        %v897 = vadd.f32 %v805, %v896
        %v898 = vpop.f32.mrb[0].mxu0
        %v899 = vadd.f32 %v809, %v898
        %900 = vmatprep.mubr.f32.mxu0 %v681
        %901 = vmatmul.mubr.f32.gmra.mrb[0].mxu0 %v680
        %v902 = vpop.f32.mrb[0].mxu0
        %v903 = vadd.f32 %v805, %v902
        %v904 = vpop.f32.mrb[0].mxu0
        %v905 = vadd.f32 %v809, %v904
        %906 = vmatprep.mubr.f32.mxu0 %v683
        %907 = vmatmul.mubr.f32.gmra.mrb[0].mxu0 %v682
        %v908 = vpop.f32.mrb[0].mxu0
        %v909 = vadd.f32 %v805, %v908
        %v910 = vpop.f32.mrb[0].mxu0
        %v911 = vadd.f32 %v809, %v910
        %912 = vmatprep.mubr.f32.mxu0 %v685
        %913 = vmatmul.mubr.f32.gmra.mrb[0].mxu0 %v684
        %v914 = vpop.f32.mrb[0].mxu0
        %v915 = vadd.f32 %v805, %v914
        %v916 = vpop.f32.mrb[0].mxu0
        %v917 = vadd.f32 %v809, %v916
        %918 = vmatprep.mubr.f32.mxu0 %v687
        %919 = vmatmul.mubr.f32.gmra.mrb[0].mxu0 %v686
        %v920 = vpop.f32.mrb[0].mxu0
        %v921 = vadd.f32 %v805, %v920
        %v922 = vpop.f32.mrb[0].mxu0
        %v923 = vadd.f32 %v809, %v922
        %924 = vmatprep.mubr.f32.mxu0 %v689
        %925 = vmatmul.mubr.f32.gmra.mrb[0].mxu0 %v688
        %v926 = vpop.f32.mrb[0].mxu0
        %v927 = vadd.f32 %v805, %v926
        %v928 = vpop.f32.mrb[0].mxu0
        %v929 = vadd.f32 %v809, %v928
        %930 = vmatprep.mubr.f32.mxu0 %v691
        %931 = vmatmul.mubr.f32.gmra.mrb[0].mxu0 %v690
        %v932 = vpop.f32.mrb[0].mxu0
        %v933 = vadd.f32 %v805, %v932
        %v934 = vpop.f32.mrb[0].mxu0
        %v935 = vadd.f32 %v809, %v934
        %936 = vmatprep.mubr.f32.mxu0 %v693
        %937 = vmatmul.mubr.f32.gmra.mrb[0].mxu0 %v692
        %v938 = vpop.f32.mrb[0].mxu0
        %v939 = vadd.f32 %v805, %v938
        %v940 = vpop.f32.mrb[0].mxu0
        %v941 = vadd.f32 %v809, %v940
        %942 = vmatprep.mubr.f32.mxu0 %v695
        %943 = vmatmul.mubr.f32.gmra.mrb[0].mxu0 %v694
        %v944 = vpop.f32.mrb[0].mxu0
        %v945 = vadd.f32 %v805, %v944
        %v946 = vpop.f32.mrb[0].mxu0
        %v947 = vadd.f32 %v809, %v946
        %948 = vmatprep.mubr.f32.mxu0 %v697
        %949 = vmatmul.mubr.f32.gmra.mrb[0].mxu0 %v696
        %v950 = vpop.f32.mrb[0].mxu0
        %v951 = vadd.f32 %v805, %v950
        %v952 = vpop.f32.mrb[0].mxu0
        %v953 = vadd.f32 %v809, %v952
        %954 = vmatprep.mubr.f32.mxu0 %v699
        %955 = vmatmul.mubr.f32.gmra.mrb[0].mxu0 %v698
        %v956 = vpop.f32.mrb[0].mxu0
        %v957 = vadd.f32 %v805, %v956
        %v958 = vpop.f32.mrb[0].mxu0
        %v959 = vadd.f32 %v809, %v958
        %960 = vmatprep.mubr.f32.mxu0 %v701
        %961 = vmatmul.mubr.f32.gmra.mrb[0].mxu0 %v700
        %v962 = vpop.f32.mrb[0].mxu0
        %v963 = vadd.f32 %v805, %v962
        %v964 = vpop.f32.mrb[0].mxu0
        %v965 = vadd.f32 %v809, %v964
        %966 = vmatprep.mubr.f32.mxu0 %v703
        %967 = vmatmul.mubr.f32.gmra.mrb[0].mxu0 %v702
        %v968 = vpop.f32.mrb[0].mxu0
        %v969 = vadd.f32 %v805, %v968
        %v970 = vpop.f32.mrb[0].mxu0
        %v971 = vadd.f32 %v809, %v970
        %972 = vmatprep.mubr.f32.mxu0 %v705
        %973 = vmatmul.mubr.f32.gmra.mrb[0].mxu0 %v704
        %v974 = vpop.f32.mrb[0].mxu0
        %v975 = vadd.f32 %v805, %v974
        %v976 = vpop.f32.mrb[0].mxu0
        %v977 = vadd.f32 %v809, %v976
        %978 = vmatprep.mubr.f32.mxu0 %v707
        %979 = vmatmul.mubr.f32.gmra.mrb[0].mxu0 %v706
        %v980 = vpop.f32.mrb[0].mxu0
        %v981 = vadd.f32 %v805, %v980
        %v982 = vpop.f32.mrb[0].mxu0
        %v983 = vadd.f32 %v809, %v982
        %984 = vmatprep.mubr.f32.mxu0 %v709
        %985 = vmatmul.mubr.f32.gmra.mrb[0].mxu0 %v708
        %v986 = vpop.f32.mrb[0].mxu0
        %v987 = vadd.f32 %v805, %v986
        %v988 = vpop.f32.mrb[0].mxu0
        %v989 = vadd.f32 %v809, %v988
        %990 = vmatprep.mubr.f32.mxu0 %v711
        %991 = vmatmul.mubr.f32.gmra.mrb[0].mxu0 %v710
        %v992 = vpop.f32.mrb[0].mxu0
        %v993 = vadd.f32 %v805, %v992
        %v994 = vpop.f32.mrb[0].mxu0
        %v995 = vadd.f32 %v809, %v994
        %996 = vmatprep.mubr.f32.mxu0 %v713
        %997 = vmatmul.mubr.f32.gmra.mrb[0].mxu0 %v712
        %v998 = vpop.f32.mrb[0].mxu0
        %v999 = vadd.f32 %v805, %v998
        %v1000 = vpop.f32.mrb[0].mxu0
        %v1001 = vadd.f32 %v809, %v1000
        %1002 = vmatprep.mubr.f32.mxu0 %v715
        %1003 = vmatmul.mubr.f32.gmra.mrb[0].mxu0 %v714
        %v1004 = vpop.f32.mrb[0].mxu0
        %v1005 = vadd.f32 %v805, %v1004
        %v1006 = vpop.f32.mrb[0].mxu0
        %v1007 = vadd.f32 %v809, %v1006
        %1008 = vmatprep.mubr.f32.mxu0 %v717
        %1009 = vmatmul.mubr.f32.gmra.mrb[0].mxu0 %v716
        %v1010 = vpop.f32.mrb[0].mxu0
        %v1011 = vadd.f32 %v805, %v1010
        %v1012 = vpop.f32.mrb[0].mxu0
        %v1013 = vadd.f32 %v809, %v1012
        %1014 = vmatprep.mubr.f32.mxu0 %v719
        %1015 = vmatmul.mubr.f32.gmra.mrb[0].mxu0 %v718
        %v1016 = vpop.f32.mrb[0].mxu0
        %v1017 = vadd.f32 %v805, %v1016
        %v1018 = vpop.f32.mrb[0].mxu0
        %v1019 = vadd.f32 %v809, %v1018
        %1020 = vmatprep.mubr.f32.mxu0 %v721
        %1021 = vmatmul.mubr.f32.gmra.mrb[0].mxu0 %v720
        %v1022 = vpop.f32.mrb[0].mxu0
        %v1023 = vadd.f32 %v805, %v1022
        %v1024 = vpop.f32.mrb[0].mxu0
        %v1025 = vadd.f32 %v809, %v1024
        %1026 = vmatprep.mubr.f32.mxu0 %v723
        %1027 = vmatmul.mubr.f32.gmra.mrb[0].mxu0 %v722
        %v1028 = vpop.f32.mrb[0].mxu0
        %v1029 = vadd.f32 %v805, %v1028
        %v1030 = vpop.f32.mrb[0].mxu0
        %v1031 = vadd.f32 %v809, %v1030
        %1032 = vmatprep.mubr.f32.mxu0 %v725
        %1033 = vmatmul.mubr.f32.gmra.mrb[0].mxu0 %v724
        %v1034 = vpop.f32.mrb[0].mxu0
        %v1035 = vadd.f32 %v805, %v1034
        %v1036 = vpop.f32.mrb[0].mxu0
        %v1037 = vadd.f32 %v809, %v1036
        %1038 = vmatprep.mubr.f32.mxu0 %v727
        %1039 = vmatmul.mubr.f32.gmra.mrb[0].mxu0 %v726
        %v1040 = vpop.f32.mrb[0].mxu0
        %v1041 = vadd.f32 %v805, %v1040
        %v1042 = vpop.f32.mrb[0].mxu0
        %v1043 = vadd.f32 %v809, %v1042
        %1044 = vmatprep.mubr.f32.mxu0 %v729
        %1045 = vmatmul.mubr.f32.gmra.mrb[0].mxu0 %v728
        %v1046 = vpop.f32.mrb[0].mxu0
        %v1047 = vadd.f32 %v805, %v1046
        %v1048 = vpop.f32.mrb[0].mxu0
        %v1049 = vadd.f32 %v809, %v1048
        %1050 = vmatprep.mubr.f32.mxu0 %v731
        %1051 = vmatmul.mubr.f32.gmra.mrb[0].mxu0 %v730
        %v1052 = vpop.f32.mrb[0].mxu0
        %v1053 = vadd.f32 %v805, %v1052
        %v1054 = vpop.f32.mrb[0].mxu0
        %v1055 = vadd.f32 %v809, %v1054
        %1056 = vmatprep.mubr.f32.mxu0 %v733
        %1057 = vmatmul.mubr.f32.gmra.mrb[0].mxu0 %v732
        %v1058 = vpop.f32.mrb[0].mxu0
        %v1059 = vadd.f32 %v805, %v1058
        %v1060 = vpop.f32.mrb[0].mxu0
        %v1061 = vadd.f32 %v809, %v1060
        %1062 = vmatprep.mubr.f32.mxu0 %v735
        %1063 = vmatmul.mubr.f32.gmra.mrb[0].mxu0 %v734
        %v1064 = vpop.f32.mrb[0].mxu0
        %v1065 = vadd.f32 %v805, %v1064
        %v1066 = vpop.f32.mrb[0].mxu0
        %v1067 = vadd.f32 %v809, %v1066
        %1068 = vdwg.mxu0
        %1069 = vst [vmem:[%s272] sm:$0xff] %v879
        %1070 = vst [vmem:[%s272 + $0x8] sm:$0xff] %v881
        %1071 = vst [vmem:[%s272 + $0x10] sm:$0xff] %v885
        %1072 = vst [vmem:[%s272 + $0x18] sm:$0xff] %v887
        %1073 = vst [vmem:[%s272 + $0x20] sm:$0xff] %v891
        %1074 = vst [vmem:[%s272 + $0x28] sm:$0xff] %v893
        %1075 = vst [vmem:[%s272 + $0x30] sm:$0xff] %v897
        %1076 = vst [vmem:[%s272 + $0x38] sm:$0xff] %v899
        %1077 = vst [vmem:[%s272 + $0x40] sm:$0xff] %v903
        %1078 = vst [vmem:[%s272 + $0x48] sm:$0xff] %v905
        %1079 = vst [vmem:[%s272 + $0x50] sm:$0xff] %v909
        %1080 = vst [vmem:[%s272 + $0x58] sm:$0xff] %v911
        %1081 = vst [vmem:[%s272 + $0x60] sm:$0xff] %v915
        %1082 = vst [vmem:[%s272 + $0x68] sm:$0xff] %v917
        %1083 = vst [vmem:[%s272 + $0x70] sm:$0xff] %v921
        %1084 = vst [vmem:[%s272 + $0x78] sm:$0xff] %v923
        %1085 = vst [vmem:[%s272 + $0x80] sm:$0xff] %v927
        %1086 = vst [vmem:[%s272 + $0x88] sm:$0xff] %v929
        %1087 = vst [vmem:[%s272 + $0x90] sm:$0xff] %v933
        %1088 = vst [vmem:[%s272 + $0x98] sm:$0xff] %v935
        %1089 = vst [vmem:[%s272 + $0xa0] sm:$0xff] %v939
        %1090 = vst [vmem:[%s272 + $0xa8] sm:$0xff] %v941
        %1091 = vst [vmem:[%s272 + $0xb0] sm:$0xff] %v945
        %1092 = vst [vmem:[%s272 + $0xb8] sm:$0xff] %v947
        %1093 = vst [vmem:[%s272 + $0xc0] sm:$0xff] %v951
        %1094 = vst [vmem:[%s272 + $0xc8] sm:$0xff] %v953
        %1095 = vst [vmem:[%s272 + $0xd0] sm:$0xff] %v957
        %1096 = vst [vmem:[%s272 + $0xd8] sm:$0xff] %v959
        %1097 = vst [vmem:[%s272 + $0xe0] sm:$0xff] %v963
        %1098 = vst [vmem:[%s272 + $0xe8] sm:$0xff] %v965
        %1099 = vst [vmem:[%s272 + $0xf0] sm:$0xff] %v969
        %1100 = vst [vmem:[%s272 + $0xf8] sm:$0xff] %v971
        %1101 = vst [vmem:[%s272 + $0x100] sm:$0xff] %v975
        %1102 = vst [vmem:[%s272 + $0x108] sm:$0xff] %v977
        %1103 = vst [vmem:[%s272 + $0x110] sm:$0xff] %v981
        %1104 = vst [vmem:[%s272 + $0x118] sm:$0xff] %v983
        %1105 = vst [vmem:[%s272 + $0x120] sm:$0xff] %v987
        %1106 = vst [vmem:[%s272 + $0x128] sm:$0xff] %v989
        %1107 = vst [vmem:[%s272 + $0x130] sm:$0xff] %v993
        %1108 = vst [vmem:[%s272 + $0x138] sm:$0xff] %v995
        %1109 = vst [vmem:[%s272 + $0x140] sm:$0xff] %v999
        %1110 = vst [vmem:[%s272 + $0x148] sm:$0xff] %v1001
        %1111 = vst [vmem:[%s272 + $0x150] sm:$0xff] %v1005
        %1112 = vst [vmem:[%s272 + $0x158] sm:$0xff] %v1007
        %1113 = vst [vmem:[%s272 + $0x160] sm:$0xff] %v1011
        %1114 = vst [vmem:[%s272 + $0x168] sm:$0xff] %v1013
        %1115 = vst [vmem:[%s272 + $0x170] sm:$0xff] %v1017
        %1116 = vst [vmem:[%s272 + $0x178] sm:$0xff] %v1019
        %1117 = vst [vmem:[%s272 + $0x180] sm:$0xff] %v1023
        %1118 = vst [vmem:[%s272 + $0x188] sm:$0xff] %v1025
        %1119 = vst [vmem:[%s272 + $0x190] sm:$0xff] %v1029
        %1120 = vst [vmem:[%s272 + $0x198] sm:$0xff] %v1031
        %1121 = vst [vmem:[%s272 + $0x1a0] sm:$0xff] %v1035
        %1122 = vst [vmem:[%s272 + $0x1a8] sm:$0xff] %v1037
        %1123 = vst [vmem:[%s272 + $0x1b0] sm:$0xff] %v1041
        %1124 = vst [vmem:[%s272 + $0x1b8] sm:$0xff] %v1043
        %1125 = vst [vmem:[%s272 + $0x1c0] sm:$0xff] %v1047
        %1126 = vst [vmem:[%s272 + $0x1c8] sm:$0xff] %v1049
        %1127 = vst [vmem:[%s272 + $0x1d0] sm:$0xff] %v1053
        %1128 = vst [vmem:[%s272 + $0x1d8] sm:$0xff] %v1055
        %1129 = vst [vmem:[%s272 + $0x1e0] sm:$0xff] %v1059
        %1130 = vst [vmem:[%s272 + $0x1e8] sm:$0xff] %v1061
        %1131 = vst [vmem:[%s272 + $0x1f0] sm:$0xff] %v1065
        %1132 = vst [vmem:[%s272 + $0x1f8] sm:$0xff] %v1067
        %s1133 = sand.u32 %s141, 1
        %s1134 = scalar_lea.sflag [#allocation4], %s1133
        %s1135 = sand.u32 %s141, 1
        %s1136 = smul.addr %s1135, 512
        %s1137 = scalar_lea.vmem [#allocation8], %s1136
        // Predicated region
        $region53: #{tpu_custom_call.1} parent=39 // pred_check
          %p1138 = pneg %p151
        $region54: #{tpu_custom_call.1} parent=39 // pred_check_branch
          %1140 = sbr.rel (%p1138) target = $region56
        $region55: #{tpu_custom_call.1} parent=39 // pred_region
          %s1141 = smul.u32 32, %s23
          %s1143 = ssub.s32 8192, 8192
          %1144 = vsyncadd %s1134, %s1143
          %s1145 = smul.addr %s1141, 2
          %s1146 = smul.addr %s1145, 128
          %s1147 = scalar_lea.hbm %s5, %s1146
          %s1148 = sshll.u32 %s1137, 4
          %s1149 = int_to_ptr.vmem [resolvable:$true] %s1148
          %1154 = dma.vmem_to_hbm [thread:$0]  %s1149, 8192, %s1147, %s1134, 256, 256, 16
        $region56: #{tpu_custom_call.1} parent=39 // pred_fallthru
          _
      $region40: #{tpu_custom_call.1} parent=5 // pred_fallthru
        _
      %p1155 = scmp.le.s32.totalorder 2, %s18
      // Predicated region
      $region57: #{tpu_custom_call.1} parent=5 // pred_check
        %p1156 = pneg %p1155
      $region58: #{tpu_custom_call.1} parent=5 // pred_check_branch
        %1158 = sbr.rel (%p1156) target = $region60
      $region59: #{tpu_custom_call.1} parent=5 // pred_region
        %s1159 = ssub.s32 %s18, 2
        // Predicated region
        $region61: #{tpu_custom_call.1} parent=59 // pred_check
          %p1160 = pneg %p157
        $region62: #{tpu_custom_call.1} parent=59 // pred_check_branch
          %1162 = sbr.rel (%p1160) target = $region64
        $region63: #{tpu_custom_call.1} parent=59 // pred_region
          %s1163 = sand.u32 %s142, 1
          %s1164 = scalar_lea.sflag [#allocation4], %s1163
          %s1165 = sand.u32 %s142, 1
          %s1166 = smul.addr %s1165, 512
          %s1167 = scalar_lea.vmem [#allocation8], %s1166
          %1168 = dma.done %s1164, 8192
        $region64: #{tpu_custom_call.1} parent=59 // pred_fallthru
          _
      $region60: #{tpu_custom_call.1} parent=5 // pred_fallthru
        _
    $region6: #{tpu_custom_call.1} parent=1 // loop_footer
      %s22 = sadd.s32 1, %s18
    $region7: #{tpu_custom_call.1} parent=1 // loop_footer_branch
      %17 = sbr.rel target = $region3
    $region8: #{tpu_custom_call.1} parent=1 // loop_exit
      _
    %1169 = vsyncpa [#allocation3], 1
    %s1170 = scalar_lea.sflag [#allocation3], 1
    %1171 = vsyncpa %s1170, 1
    %1172 = vsyncpa [#allocation6], 1
    %1173 = vsyncpa [#allocation4], 1
    %s1174 = scalar_lea.sflag [#allocation4], 1
    %1175 = vsyncpa %s1174, 1

</llo_original>
